<compile_context>
chip_gen: v7x
topology: tpu7x:2x2x1
jax: 0.10.0
libtpu: 0.0.40
codegen_flags: <defaults>
</compile_context>

<pallas_src>
import functools

import jax
import jax.numpy as jnp
from jax import lax
from jax.experimental import pallas as pl
from jax.experimental.pallas import tpu as pltpu


# ------------------------------ Pallas kernels ----------------------------- #

def _matmul_act_kernel(p_ref, w_ref, o_ref, *, act):
    """out_tile = act(patches_tile @ w).  p: [tm,K] bf16, w: [K,Cp] bf16."""
    acc = jnp.dot(p_ref[...], w_ref[...], preferred_element_type=jnp.float32)
    if act == "lrelu":
        acc = jnp.where(acc >= 0.0, acc, 0.2 * acc)
    elif act == "sigmoid":
        # Exact sigmoid: this is the model output, so no approx reciprocal.
        acc = 1.0 / (1.0 + jnp.exp(-acc))
    else:
        raise ValueError(act)
    o_ref[...] = acc.astype(o_ref.dtype)


def _matmul_stats_kernel(p_ref, w_ref, o_ref, stats_ref):
    """out_tile = patches_tile @ w (bf16 store); emit per-tile (sum, sumsq)."""
    acc = jnp.dot(p_ref[...], w_ref[...], preferred_element_type=jnp.float32)
    o_ref[...] = acc.astype(o_ref.dtype)
    s = jnp.sum(acc, axis=0, keepdims=True)            # (1, Cp) f32
    ss = jnp.sum(acc * acc, axis=0, keepdims=True)     # (1, Cp) f32
    stats_ref[0] = jnp.concatenate([s, ss], axis=0)    # (2, Cp)


def _bn_lrelu_kernel(x_ref, scale_ref, shift_ref, o_ref):
    """LeakyReLU(x * scale + shift), per-channel scale/shift, bf16 in/out."""
    y = x_ref[...].astype(jnp.float32) * scale_ref[...] + shift_ref[...]
    y = jnp.where(y >= 0.0, y, 0.2 * y)
    o_ref[...] = y.astype(o_ref.dtype)


# -------------------------------- JAX glue --------------------------------- #

def _round_up(x, m):
    return (x + m - 1) // m * m


def _pick_tile(M, tile_m):
    """Row tile: multiple of 16 (bf16 sublane packing); capped to ~M/2 so the
    'parallel' M axis has >= 2 grid steps when M allows (keeps both v7x
    TensorCores busy; harmless on v5e/v6e)."""
    half = _round_up(max(M // 2, 16), 16)
    return max(16, min(tile_m, half))


def _compiler_params(tile_bytes):
    # 2x for double-buffered pipelining plus headroom; floor 16 MiB, cap well
    # under v7x's 64 MiB physical VMEM.
    need = 2 * int(tile_bytes) + (4 << 20)
    need = max(need, 16 << 20)
    need = min(need, 48 << 20)
    return pltpu.CompilerParams(
        dimension_semantics=("parallel",),
        vmem_limit_bytes=int(need),
    )


def _im2col_nhwc(x, kh, kw, stride, pad):
    """x: [N,H,W,C] (bf16) -> ([N*Ho*Wo, kh*kw*C], Ho, Wo); K ordered (kh,kw,C)."""
    N, H, W, C = x.shape
    Ho = (H + 2 * pad - kh) // stride + 1
    Wo = (W + 2 * pad - kw) // stride + 1
    xp = jnp.pad(x, ((0, 0), (pad, pad), (pad, pad), (0, 0)))
    taps = []
    for i in range(kh):
        for j in range(kw):
            taps.append(xp[:, i:i + stride * Ho:stride, j:j + stride * Wo:stride, :])
    p = jnp.stack(taps, axis=3)                          # [N, Ho, Wo, kh*kw, C]
    return p.reshape(N * Ho * Wo, kh * kw * C), Ho, Wo


def _prep_weight(w, k_pad, cout_pad):
    """PyTorch OIHW weight -> bf16 [K_pad, Cout_pad] matching im2col K order."""
    cout, cin, kh, kw = w.shape
    wk = jnp.transpose(w, (2, 3, 1, 0)).reshape(kh * kw * cin, cout)
    wk = jnp.pad(wk, ((0, k_pad - kh * kw * cin), (0, cout_pad - cout)))
    return wk.astype(jnp.bfloat16)


def conv_block(x_nhwc, w, *, stride, pad, tile_m=1024, act="lrelu",
               gamma=None, beta=None):
    """One Conv2d(4,4,bias=False) [+ BatchNorm2d(train)] + activation, NHWC.

    x_nhwc: [N, H, W, C_store]  (C_store may exceed the conv's true C_in; only
            the first C_in channels are read).
    w:      [C_out, C_in, KH, KW]  (PyTorch OIHW).
    Returns [N, Ho, Wo, Cp], Cp = round_up(C_out, 128); padded channels are 0
    (or sigmoid(0) for the final layer, which the caller ignores).
    """
    N = x_nhwc.shape[0]
    cout, cin, kh, kw = w.shape

    # Drop any carried channel padding and narrow to bf16 BEFORE building the
    # patch stream -- this is the dominant HBM consumer of the whole forward.
    x = x_nhwc[..., :cin].astype(jnp.bfloat16)
    patches, Ho, Wo = _im2col_nhwc(x, kh, kw, stride, pad)
    M, k_raw = patches.shape
    K = _round_up(k_raw, 128)
    Cp = _round_up(cout, 128)

    tile = _pick_tile(M, tile_m)
    grid_m = pl.cdiv(M, tile)
    m_pad = grid_m * tile

    # Zero rows / zero K-lanes contribute nothing to the matmul or BN sums.
    patches = jnp.pad(patches, ((0, m_pad - M), (0, K - k_raw)))
    w2 = _prep_weight(w, K, Cp)

    out_dtype = jnp.float32 if act == "sigmoid" else jnp.bfloat16
    out_bytes = 4 if out_dtype == jnp.float32 else 2

    p_spec = pl.BlockSpec((tile, K), lambda i: (i, 0))
    w_spec = pl.BlockSpec((K, Cp), lambda i: (0, 0))
    o_spec = pl.BlockSpec((tile, Cp), lambda i: (i, 0))
    mm_bytes = tile * K * 2 + K * Cp * 2 + tile * Cp * out_bytes + 2 * Cp * 4

    if gamma is None:
        out = pl.pallas_call(
            functools.partial(_matmul_act_kernel, act=act),
            out_shape=jax.ShapeDtypeStruct((m_pad, Cp), out_dtype),
            grid=(grid_m,),
            in_specs=[p_spec, w_spec],
            out_specs=o_spec,
            compiler_params=_compiler_params(mm_bytes),
        )(patches, w2)
    else:
        # Pass 1: conv matmul (bf16 store) + per-tile channel sums / sums-of-sq.
        conv_out, stats = pl.pallas_call(
            _matmul_stats_kernel,
            out_shape=(jax.ShapeDtypeStruct((m_pad, Cp), jnp.bfloat16),
                       jax.ShapeDtypeStruct((grid_m, 2, Cp), jnp.float32)),
            grid=(grid_m,),
            in_specs=[p_spec, w_spec],
            out_specs=(o_spec, pl.BlockSpec((1, 2, Cp), lambda i: (i, 0, 0))),
            compiler_params=_compiler_params(mm_bytes),
        )(patches, w2)

        # Finalize global (whole-M) biased batch statistics.  Padded M rows are
        # all-zero so they contribute nothing; divide by the true M.
        # TODO(synk): switch to centered/compensated sums if tolerance tightens
        # (E[x^2]-E[x]^2 can cancel for large-mean activations).
        total = jnp.sum(stats, axis=0)                   # [2, Cp]
        mean = total[0] / M
        var = total[1] / M - mean * mean
        inv = lax.rsqrt(var + 1e-5)
        gamma_p = jnp.pad(gamma.reshape(-1), (0, Cp - cout), constant_values=1.0)
        beta_p = jnp.pad(beta.reshape(-1), (0, Cp - cout))
        scale = (gamma_p * inv)[None, :].astype(jnp.float32)             # [1, Cp]
        shift = (beta_p - mean * gamma_p * inv)[None, :].astype(jnp.float32)

        # Pass 2: normalize + affine + LeakyReLU; bf16 in/out, in-place via
        # input/output aliasing, row tile decoupled from the matmul tile.
        # TODO(synk): fold this into the next layer's patch load to remove the
        # [M,Cp] round trip entirely (needs per-channel boundary-pad handling).
        bn_tile = tile
        limit = min(m_pad, 2048)
        while (bn_tile * 2 <= limit and m_pad % (bn_tile * 2) == 0
               and m_pad // (bn_tile * 2) >= 2):
            bn_tile *= 2
        bn_grid = m_pad // bn_tile
        bn_spec = pl.BlockSpec((bn_tile, Cp), lambda i: (i, 0))
        bn_bytes = 2 * bn_tile * Cp * 2 + 2 * Cp * 4
        out = pl.pallas_call(
            _bn_lrelu_kernel,
            out_shape=jax.ShapeDtypeStruct((m_pad, Cp), jnp.bfloat16),
            grid=(bn_grid,),
            in_specs=[bn_spec,
                      pl.BlockSpec((1, Cp), lambda i: (0, 0)),
                      pl.BlockSpec((1, Cp), lambda i: (0, 0))],
            out_specs=bn_spec,
            input_output_aliases={0: 0},
            compiler_params=_compiler_params(bn_bytes),
        )(conv_out, scale, shift)

    return out[:M].reshape(N, Ho, Wo, Cp)


def discriminator_forward(x_nchw, params, *, tile_m=1024):
    """Reproduces Discriminator.forward(input) = main(input).view(-1,1).squeeze(1)."""
    h = jnp.transpose(x_nchw, (0, 2, 3, 1))   # NCHW -> NHWC once, at the boundary
    h = conv_block(h, params["w1"], stride=2, pad=1, tile_m=tile_m, act="lrelu")
    h = conv_block(h, params["w2"], stride=2, pad=1, tile_m=tile_m,
                   gamma=params["g2"], beta=params["b2"])
    h = conv_block(h, params["w3"], stride=2, pad=1, tile_m=tile_m,
                   gamma=params["g3"], beta=params["b3"])
    h = conv_block(h, params["w4"], stride=1, pad=0, tile_m=tile_m, act="sigmoid")
    # h: [N, 1, 1, Cp] f32; channel 0 is the real conv output (true C_out = 1).
    return h[:, :, :, 0].reshape(-1)


# ------------------------------ parameter init ------------------------------ #

def init_params(key, nc, ndf):
    k1, k2, k3, k4 = jax.random.split(key, 4)

    def conv_w(k, cout, cin):
        # DCGAN N(0, 0.02) init; snapped to the bf16 grid so the Pallas path
        # (bf16 MXU operands) and the f32 reference see identical weights.
        w = 0.02 * jax.random.normal(k, (cout, cin, 4, 4), jnp.float32)
        return w.astype(jnp.bfloat16).astype(jnp.float32)

    return {
        "w1": conv_w(k1, ndf, nc),
        "w2": conv_w(k2, ndf * 2, ndf),
        "g2": jnp.ones((ndf * 2,), jnp.float32),    # BatchNorm2d default affine
        "b2": jnp.zeros((ndf * 2,), jnp.float32),
        "w3": conv_w(k3, ndf * 4, ndf * 2),
        "g3": jnp.ones((ndf * 4,), jnp.float32),
        "b3": jnp.zeros((ndf * 4,), jnp.float32),
        "w4": conv_w(k4, 1, ndf * 4),
    }


# ---------------------------- plain-JAX reference --------------------------- #

def reference_forward(x, params):
    def conv(h, w, stride, pad):
        return lax.conv_general_dilated(
            h, w, (stride, stride), [(pad, pad), (pad, pad)],
            dimension_numbers=("NCHW", "OIHW", "NCHW"))

    def lrelu(h):
        return jnp.where(h >= 0, h, 0.2 * h)

    def bn(h, g, b):
        mean = jnp.mean(h, axis=(0, 2, 3), keepdims=True)
        var = jnp.mean(jnp.square(h - mean), axis=(0, 2, 3), keepdims=True)
        return ((h - mean) * lax.rsqrt(var + 1e-5) * g.reshape(1, -1, 1, 1)
                + b.reshape(1, -1, 1, 1))

    h = lrelu(conv(x, params["w1"], 2, 1))
    h = lrelu(bn(conv(h, params["w2"], 2, 1), params["g2"], params["b2"]))
    h = lrelu(bn(conv(h, params["w3"], 2, 1), params["g3"], params["b3"]))
    h = jax.nn.sigmoid(conv(h, params["w4"], 1, 0))
    return h.reshape(-1, 1).squeeze(1)


# ----------------------------------- main ----------------------------------- #

if __name__ == "__main__":
    # Small config: nc=3 input channels, ndf=8 base width, batch=2, 32x32 input
    # (32 -> 16 -> 8 -> 4 -> 1, the 4-conv DCGAN discriminator).  tile_m=32 so
    # every layer's M-grid has several tiles, exercising the tiled
    # global-statistics BatchNorm path and the decoupled BN row tile.
    nc, ndf, N, H = 3, 8, 2, 32

    key = jax.random.PRNGKey(0)
    kx, kp = jax.random.split(key)
    x = jax.random.normal(kx, (N, nc, H, H), jnp.float32)
    x = x.astype(jnp.bfloat16).astype(jnp.float32)   # same values on both paths
    params = init_params(kp, nc, ndf)

    fwd = jax.jit(lambda xx, pp: discriminator_forward(xx, pp, tile_m=32))
    out = jax.block_until_ready(fwd(x, params))
    ref = jax.block_until_ready(reference_forward(x, params))

    assert out.shape == (N,), out.shape
    # bf16 MXU operands + bf16 inter-layer activations vs. an all-f32 reference.
    assert jnp.allclose(out, ref, atol=2e-2, rtol=2e-2), (out, ref)
    print("KERNEL_OK")
</pallas_src>

<mosaic_0001>
module attributes {stable_mosaic.version = 11 : i64} {
  func.func @_matmul_act_kernel(%arg0: i32, %arg1: memref<32x128xbf16, #tpu.memory_space<vmem>>, %arg2: memref<128x128xbf16, #tpu.memory_space<vmem>>, %arg3: memref<32x128xbf16, #tpu.memory_space<vmem>>) attributes {dimension_semantics = [#tpu.dimension_semantics<parallel>], iteration_bounds = array<i64: 16>, scalar_prefetch = 0 : i64, scratch_operands = 0 : i64, tpu.core_type = #tpu.core_type<tc>, window_params = [{transform_indices = @transform_0, window_bounds = array<i64: 32, 128>}, {pipeline_mode = #tpu.pipeline_mode<synchronous>, transform_indices = @transform_1, window_bounds = array<i64: 128, 128>}, {transform_indices = @transform_2, window_bounds = array<i64: 32, 128>}]} {
    %c0 = arith.constant 0 : index
    %c0_0 = arith.constant 0 : index
    %0 = vector.load %arg1[%c0, %c0_0] : memref<32x128xbf16, #tpu.memory_space<vmem>>, vector<32x128xbf16>
    %c0_1 = arith.constant 0 : index
    %c0_2 = arith.constant 0 : index
    %1 = vector.load %arg2[%c0_1, %c0_2] : memref<128x128xbf16, #tpu.memory_space<vmem>>, vector<128x128xbf16>
    %cst = arith.constant dense<0.000000e+00> : vector<32x128xf32>
    %2 = tpu.matmul %0, %1, %cst {dimension_numbers = #tpu.dot_dimension_numbers<[1], [0], [0], [1], [0, 0, 1, 1], [], []>} : vector<32x128xbf16>, vector<128x128xbf16>, vector<32x128xf32> -> vector<32x128xf32>
    %cst_3 = arith.constant 0.000000e+00 : f32
    %3 = vector.broadcast %cst_3 : f32 to vector<32x128xf32>
    %4 = arith.cmpf oge, %2, %3 : vector<32x128xf32>
    %cst_4 = arith.constant 2.000000e-01 : f32
    %5 = vector.broadcast %cst_4 : f32 to vector<32x128xf32>
    %6 = arith.mulf %5, %2 : vector<32x128xf32>
    %7 = arith.select %4, %2, %6 : vector<32x128xi1>, vector<32x128xf32>
    %8 = arith.truncf %7 : vector<32x128xf32> to vector<32x128xbf16>
    %c0_5 = arith.constant 0 : index
    %c0_6 = arith.constant 0 : index
    %9 = vector.load %arg3[%c0_5, %c0_6] : memref<32x128xbf16, #tpu.memory_space<vmem>>, vector<32x128xbf16>
    tpu.vector_store %arg3[%c0_5, %c0_6], %8 {strides = array<i32>} : memref<32x128xbf16, #tpu.memory_space<vmem>>, vector<32x128xbf16>,
    return
  }
  func.func @transform_0(%arg0: i32) -> (i32, i32) {
    %c0_i32 = arith.constant 0 : i32
    %c0_i32_0 = arith.constant 0 : i32
    return %arg0, %c0_i32 : i32, i32
  }
  func.func @transform_1(%arg0: i32) -> (i32, i32) {
    %c0_i32 = arith.constant 0 : i32
    %c0_i32_0 = arith.constant 0 : i32
    %c0_i32_1 = arith.constant 0 : i32
    return %c0_i32, %c0_i32_0 : i32, i32
  }
  func.func @transform_2(%arg0: i32) -> (i32, i32) {
    %c0_i32 = arith.constant 0 : i32
    %c0_i32_0 = arith.constant 0 : i32
    return %arg0, %c0_i32 : i32, i32
  }
}

module attributes {stable_mosaic.version = 11 : i64} {
  func.func @_matmul_stats_kernel(%arg0: i32, %arg1: memref<32x128xbf16, #tpu.memory_space<vmem>>, %arg2: memref<128x128xbf16, #tpu.memory_space<vmem>>, %arg3: memref<32x128xbf16, #tpu.memory_space<vmem>>, %arg4: memref<1x2x128xf32, #tpu.memory_space<vmem>>) attributes {dimension_semantics = [#tpu.dimension_semantics<parallel>], iteration_bounds = array<i64: 4>, scalar_prefetch = 0 : i64, scratch_operands = 0 : i64, tpu.core_type = #tpu.core_type<tc>, window_params = [{transform_indices = @transform_0, window_bounds = array<i64: 32, 128>}, {pipeline_mode = #tpu.pipeline_mode<synchronous>, transform_indices = @transform_1, window_bounds = array<i64: 128, 128>}, {transform_indices = @transform_2, window_bounds = array<i64: 32, 128>}, {transform_indices = @transform_3, window_bounds = array<i64: 1, 2, 128>}]} {
    %c0 = arith.constant 0 : index
    %c0_0 = arith.constant 0 : index
    %0 = vector.load %arg1[%c0, %c0_0] : memref<32x128xbf16, #tpu.memory_space<vmem>>, vector<32x128xbf16>
    %c0_1 = arith.constant 0 : index
    %c0_2 = arith.constant 0 : index
    %1 = vector.load %arg2[%c0_1, %c0_2] : memref<128x128xbf16, #tpu.memory_space<vmem>>, vector<128x128xbf16>
    %cst = arith.constant dense<0.000000e+00> : vector<32x128xf32>
    %2 = tpu.matmul %0, %1, %cst {dimension_numbers = #tpu.dot_dimension_numbers<[1], [0], [0], [1], [0, 0, 1, 1], [], []>} : vector<32x128xbf16>, vector<128x128xbf16>, vector<32x128xf32> -> vector<32x128xf32>
    %3 = arith.truncf %2 : vector<32x128xf32> to vector<32x128xbf16>
    %c0_3 = arith.constant 0 : index
    %c0_4 = arith.constant 0 : index
    %4 = vector.load %arg3[%c0_3, %c0_4] : memref<32x128xbf16, #tpu.memory_space<vmem>>, vector<32x128xbf16>
    tpu.vector_store %arg3[%c0_3, %c0_4], %3 {strides = array<i32>} : memref<32x128xbf16, #tpu.memory_space<vmem>>, vector<32x128xbf16>,
    %cst_5 = arith.constant dense<0.000000e+00> : vector<128xf32>
    %5 = vector.multi_reduction <add>, %2, %cst_5 [0] : vector<32x128xf32> to vector<128xf32>
    %6 = vector.shape_cast %5 : vector<128xf32> to vector<1x128xf32>
    %7 = arith.mulf %2, %2 : vector<32x128xf32>
    %cst_6 = arith.constant dense<0.000000e+00> : vector<128xf32>
    %8 = vector.multi_reduction <add>, %7, %cst_6 [0] : vector<32x128xf32> to vector<128xf32>
    %9 = vector.shape_cast %8 : vector<128xf32> to vector<1x128xf32>
    %10 = tpu.concatenate %6, %9 in 0 : vector<1x128xf32>, vector<1x128xf32> -> vector<2x128xf32>
    %c0_7 = arith.constant 0 : index
    %c0_8 = arith.constant 0 : index
    %c0_9 = arith.constant 0 : index
    %11 = vector.load %arg4[%c0_7, %c0_8, %c0_9] : memref<1x2x128xf32, #tpu.memory_space<vmem>>, vector<1x2x128xf32>
    %12 = vector.shape_cast %11 : vector<1x2x128xf32> to vector<2x128xf32>
    %13 = vector.shape_cast %10 : vector<2x128xf32> to vector<1x2x128xf32>
    tpu.vector_store %arg4[%c0_7, %c0_8, %c0_9], %13 {strides = array<i32>} : memref<1x2x128xf32, #tpu.memory_space<vmem>>, vector<1x2x128xf32>,
    return
  }
  func.func @transform_0(%arg0: i32) -> (i32, i32) {
    %c0_i32 = arith.constant 0 : i32
    %c0_i32_0 = arith.constant 0 : i32
    return %arg0, %c0_i32 : i32, i32
  }
  func.func @transform_1(%arg0: i32) -> (i32, i32) {
    %c0_i32 = arith.constant 0 : i32
    %c0_i32_0 = arith.constant 0 : i32
    %c0_i32_1 = arith.constant 0 : i32
    return %c0_i32, %c0_i32_0 : i32, i32
  }
  func.func @transform_2(%arg0: i32) -> (i32, i32) {
    %c0_i32 = arith.constant 0 : i32
    %c0_i32_0 = arith.constant 0 : i32
    return %arg0, %c0_i32 : i32, i32
  }
  func.func @transform_3(%arg0: i32) -> (i32, i32, i32) {
    %c0_i32 = arith.constant 0 : i32
    %c0_i32_0 = arith.constant 0 : i32
    %c0_i32_1 = arith.constant 0 : i32
    return %arg0, %c0_i32, %c0_i32_0 : i32, i32, i32
  }
}

module attributes {stable_mosaic.version = 11 : i64} {
  func.func @_bn_lrelu_kernel(%arg0: i32, %arg1: memref<64x128xbf16, #tpu.memory_space<vmem>>, %arg2: memref<1x128xf32, #tpu.memory_space<vmem>>, %arg3: memref<1x128xf32, #tpu.memory_space<vmem>>, %arg4: memref<64x128xbf16, #tpu.memory_space<vmem>>) attributes {dimension_semantics = [#tpu.dimension_semantics<parallel>], iteration_bounds = array<i64: 2>, scalar_prefetch = 0 : i64, scratch_operands = 0 : i64, tpu.core_type = #tpu.core_type<tc>, window_params = [{transform_indices = @transform_0, window_bounds = array<i64: 64, 128>}, {pipeline_mode = #tpu.pipeline_mode<synchronous>, transform_indices = @transform_1, window_bounds = array<i64: 1, 128>}, {pipeline_mode = #tpu.pipeline_mode<synchronous>, transform_indices = @transform_2, window_bounds = array<i64: 1, 128>}, {transform_indices = @transform_3, window_bounds = array<i64: 64, 128>}]} {
    %c0 = arith.constant 0 : index
    %c0_0 = arith.constant 0 : index
    %0 = vector.load %arg1[%c0, %c0_0] : memref<64x128xbf16, #tpu.memory_space<vmem>>, vector<64x128xbf16>
    %1 = arith.extf %0 : vector<64x128xbf16> to vector<64x128xf32>
    %c0_1 = arith.constant 0 : index
    %c0_2 = arith.constant 0 : index
    %2 = vector.load %arg2[%c0_1, %c0_2] : memref<1x128xf32, #tpu.memory_space<vmem>>, vector<1x128xf32>
    %3 = vector.broadcast %2 : vector<1x128xf32> to vector<64x128xf32>
    %4 = arith.mulf %1, %3 : vector<64x128xf32>
    %c0_3 = arith.constant 0 : index
    %c0_4 = arith.constant 0 : index
    %5 = vector.load %arg3[%c0_3, %c0_4] : memref<1x128xf32, #tpu.memory_space<vmem>>, vector<1x128xf32>
    %6 = vector.broadcast %5 : vector<1x128xf32> to vector<64x128xf32>
    %7 = arith.addf %4, %6 : vector<64x128xf32>
    %cst = arith.constant 0.000000e+00 : f32
    %8 = vector.broadcast %cst : f32 to vector<64x128xf32>
    %9 = arith.cmpf oge, %7, %8 : vector<64x128xf32>
    %cst_5 = arith.constant 2.000000e-01 : f32
    %10 = vector.broadcast %cst_5 : f32 to vector<64x128xf32>
    %11 = arith.mulf %10, %7 : vector<64x128xf32>
    %12 = arith.select %9, %7, %11 : vector<64x128xi1>, vector<64x128xf32>
    %13 = arith.truncf %12 : vector<64x128xf32> to vector<64x128xbf16>
    %c0_6 = arith.constant 0 : index
    %c0_7 = arith.constant 0 : index
    %14 = vector.load %arg4[%c0_6, %c0_7] : memref<64x128xbf16, #tpu.memory_space<vmem>>, vector<64x128xbf16>
    tpu.vector_store %arg4[%c0_6, %c0_7], %13 {strides = array<i32>} : memref<64x128xbf16, #tpu.memory_space<vmem>>, vector<64x128xbf16>,
    return
  }
  func.func @transform_0(%arg0: i32) -> (i32, i32) {
    %c0_i32 = arith.constant 0 : i32
    %c0_i32_0 = arith.constant 0 : i32
    return %arg0, %c0_i32 : i32, i32
  }
  func.func @transform_1(%arg0: i32) -> (i32, i32) {
    %c0_i32 = arith.constant 0 : i32
    %c0_i32_0 = arith.constant 0 : i32
    %c0_i32_1 = arith.constant 0 : i32
    return %c0_i32, %c0_i32_0 : i32, i32
  }
  func.func @transform_2(%arg0: i32) -> (i32, i32) {
    %c0_i32 = arith.constant 0 : i32
    %c0_i32_0 = arith.constant 0 : i32
    %c0_i32_1 = arith.constant 0 : i32
    return %c0_i32, %c0_i32_0 : i32, i32
  }
  func.func @transform_3(%arg0: i32) -> (i32, i32) {
    %c0_i32 = arith.constant 0 : i32
    %c0_i32_0 = arith.constant 0 : i32
    return %arg0, %c0_i32 : i32, i32
  }
}

module attributes {stable_mosaic.version = 11 : i64} {
  func.func @_matmul_stats_kernel(%arg0: i32, %arg1: memref<16x256xbf16, #tpu.memory_space<vmem>>, %arg2: memref<256x128xbf16, #tpu.memory_space<vmem>>, %arg3: memref<16x128xbf16, #tpu.memory_space<vmem>>, %arg4: memref<1x2x128xf32, #tpu.memory_space<vmem>>) attributes {dimension_semantics = [#tpu.dimension_semantics<parallel>], iteration_bounds = array<i64: 2>, scalar_prefetch = 0 : i64, scratch_operands = 0 : i64, tpu.core_type = #tpu.core_type<tc>, window_params = [{transform_indices = @transform_0, window_bounds = array<i64: 16, 256>}, {pipeline_mode = #tpu.pipeline_mode<synchronous>, transform_indices = @transform_1, window_bounds = array<i64: 256, 128>}, {transform_indices = @transform_2, window_bounds = array<i64: 16, 128>}, {transform_indices = @transform_3, window_bounds = array<i64: 1, 2, 128>}]} {
    %c0 = arith.constant 0 : index
    %c0_0 = arith.constant 0 : index
    %0 = vector.load %arg1[%c0, %c0_0] : memref<16x256xbf16, #tpu.memory_space<vmem>>, vector<16x256xbf16>
    %c0_1 = arith.constant 0 : index
    %c0_2 = arith.constant 0 : index
    %1 = vector.load %arg2[%c0_1, %c0_2] : memref<256x128xbf16, #tpu.memory_space<vmem>>, vector<256x128xbf16>
    %cst = arith.constant dense<0.000000e+00> : vector<16x128xf32>
    %2 = tpu.matmul %0, %1, %cst {dimension_numbers = #tpu.dot_dimension_numbers<[1], [0], [0], [1], [0, 0, 1, 1], [], []>} : vector<16x256xbf16>, vector<256x128xbf16>, vector<16x128xf32> -> vector<16x128xf32>
    %3 = arith.truncf %2 : vector<16x128xf32> to vector<16x128xbf16>
    %c0_3 = arith.constant 0 : index
    %c0_4 = arith.constant 0 : index
    %4 = vector.load %arg3[%c0_3, %c0_4] : memref<16x128xbf16, #tpu.memory_space<vmem>>, vector<16x128xbf16>
    tpu.vector_store %arg3[%c0_3, %c0_4], %3 {strides = array<i32>} : memref<16x128xbf16, #tpu.memory_space<vmem>>, vector<16x128xbf16>,
    %cst_5 = arith.constant dense<0.000000e+00> : vector<128xf32>
    %5 = vector.multi_reduction <add>, %2, %cst_5 [0] : vector<16x128xf32> to vector<128xf32>
    %6 = vector.shape_cast %5 : vector<128xf32> to vector<1x128xf32>
    %7 = arith.mulf %2, %2 : vector<16x128xf32>
    %cst_6 = arith.constant dense<0.000000e+00> : vector<128xf32>
    %8 = vector.multi_reduction <add>, %7, %cst_6 [0] : vector<16x128xf32> to vector<128xf32>
    %9 = vector.shape_cast %8 : vector<128xf32> to vector<1x128xf32>
    %10 = tpu.concatenate %6, %9 in 0 : vector<1x128xf32>, vector<1x128xf32> -> vector<2x128xf32>
    %c0_7 = arith.constant 0 : index
    %c0_8 = arith.constant 0 : index
    %c0_9 = arith.constant 0 : index
    %11 = vector.load %arg4[%c0_7, %c0_8, %c0_9] : memref<1x2x128xf32, #tpu.memory_space<vmem>>, vector<1x2x128xf32>
    %12 = vector.shape_cast %11 : vector<1x2x128xf32> to vector<2x128xf32>
    %13 = vector.shape_cast %10 : vector<2x128xf32> to vector<1x2x128xf32>
    tpu.vector_store %arg4[%c0_7, %c0_8, %c0_9], %13 {strides = array<i32>} : memref<1x2x128xf32, #tpu.memory_space<vmem>>, vector<1x2x128xf32>,
    return
  }
  func.func @transform_0(%arg0: i32) -> (i32, i32) {
    %c0_i32 = arith.constant 0 : i32
    %c0_i32_0 = arith.constant 0 : i32
    return %arg0, %c0_i32 : i32, i32
  }
  func.func @transform_1(%arg0: i32) -> (i32, i32) {
    %c0_i32 = arith.constant 0 : i32
    %c0_i32_0 = arith.constant 0 : i32
    %c0_i32_1 = arith.constant 0 : i32
    return %c0_i32, %c0_i32_0 : i32, i32
  }
  func.func @transform_2(%arg0: i32) -> (i32, i32) {
    %c0_i32 = arith.constant 0 : i32
    %c0_i32_0 = arith.constant 0 : i32
    return %arg0, %c0_i32 : i32, i32
  }
  func.func @transform_3(%arg0: i32) -> (i32, i32, i32) {
    %c0_i32 = arith.constant 0 : i32
    %c0_i32_0 = arith.constant 0 : i32
    %c0_i32_1 = arith.constant 0 : i32
    return %arg0, %c0_i32, %c0_i32_0 : i32, i32, i32
  }
}

module attributes {stable_mosaic.version = 11 : i64} {
  func.func @_bn_lrelu_kernel(%arg0: i32, %arg1: memref<16x128xbf16, #tpu.memory_space<vmem>>, %arg2: memref<1x128xf32, #tpu.memory_space<vmem>>, %arg3: memref<1x128xf32, #tpu.memory_space<vmem>>, %arg4: memref<16x128xbf16, #tpu.memory_space<vmem>>) attributes {dimension_semantics = [#tpu.dimension_semantics<parallel>], iteration_bounds = array<i64: 2>, scalar_prefetch = 0 : i64, scratch_operands = 0 : i64, tpu.core_type = #tpu.core_type<tc>, window_params = [{transform_indices = @transform_0, window_bounds = array<i64: 16, 128>}, {pipeline_mode = #tpu.pipeline_mode<synchronous>, transform_indices = @transform_1, window_bounds = array<i64: 1, 128>}, {pipeline_mode = #tpu.pipeline_mode<synchronous>, transform_indices = @transform_2, window_bounds = array<i64: 1, 128>}, {transform_indices = @transform_3, window_bounds = array<i64: 16, 128>}]} {
    %c0 = arith.constant 0 : index
    %c0_0 = arith.constant 0 : index
    %0 = vector.load %arg1[%c0, %c0_0] : memref<16x128xbf16, #tpu.memory_space<vmem>>, vector<16x128xbf16>
    %1 = arith.extf %0 : vector<16x128xbf16> to vector<16x128xf32>
    %c0_1 = arith.constant 0 : index
    %c0_2 = arith.constant 0 : index
    %2 = vector.load %arg2[%c0_1, %c0_2] : memref<1x128xf32, #tpu.memory_space<vmem>>, vector<1x128xf32>
    %3 = vector.broadcast %2 : vector<1x128xf32> to vector<16x128xf32>
    %4 = arith.mulf %1, %3 : vector<16x128xf32>
    %c0_3 = arith.constant 0 : index
    %c0_4 = arith.constant 0 : index
    %5 = vector.load %arg3[%c0_3, %c0_4] : memref<1x128xf32, #tpu.memory_space<vmem>>, vector<1x128xf32>
    %6 = vector.broadcast %5 : vector<1x128xf32> to vector<16x128xf32>
    %7 = arith.addf %4, %6 : vector<16x128xf32>
    %cst = arith.constant 0.000000e+00 : f32
    %8 = vector.broadcast %cst : f32 to vector<16x128xf32>
    %9 = arith.cmpf oge, %7, %8 : vector<16x128xf32>
    %cst_5 = arith.constant 2.000000e-01 : f32
    %10 = vector.broadcast %cst_5 : f32 to vector<16x128xf32>
    %11 = arith.mulf %10, %7 : vector<16x128xf32>
    %12 = arith.select %9, %7, %11 : vector<16x128xi1>, vector<16x128xf32>
    %13 = arith.truncf %12 : vector<16x128xf32> to vector<16x128xbf16>
    %c0_6 = arith.constant 0 : index
    %c0_7 = arith.constant 0 : index
    %14 = vector.load %arg4[%c0_6, %c0_7] : memref<16x128xbf16, #tpu.memory_space<vmem>>, vector<16x128xbf16>
    tpu.vector_store %arg4[%c0_6, %c0_7], %13 {strides = array<i32>} : memref<16x128xbf16, #tpu.memory_space<vmem>>, vector<16x128xbf16>,
    return
  }
  func.func @transform_0(%arg0: i32) -> (i32, i32) {
    %c0_i32 = arith.constant 0 : i32
    %c0_i32_0 = arith.constant 0 : i32
    return %arg0, %c0_i32 : i32, i32
  }
  func.func @transform_1(%arg0: i32) -> (i32, i32) {
    %c0_i32 = arith.constant 0 : i32
    %c0_i32_0 = arith.constant 0 : i32
    %c0_i32_1 = arith.constant 0 : i32
    return %c0_i32, %c0_i32_0 : i32, i32
  }
  func.func @transform_2(%arg0: i32) -> (i32, i32) {
    %c0_i32 = arith.constant 0 : i32
    %c0_i32_0 = arith.constant 0 : i32
    %c0_i32_1 = arith.constant 0 : i32
    return %c0_i32, %c0_i32_0 : i32, i32
  }
  func.func @transform_3(%arg0: i32) -> (i32, i32) {
    %c0_i32 = arith.constant 0 : i32
    %c0_i32_0 = arith.constant 0 : i32
    return %arg0, %c0_i32 : i32, i32
  }
}

module attributes {stable_mosaic.version = 11 : i64} {
  func.func @_matmul_act_kernel(%arg0: i32, %arg1: memref<16x512xbf16, #tpu.memory_space<vmem>>, %arg2: memref<512x128xbf16, #tpu.memory_space<vmem>>, %arg3: memref<16x128xf32, #tpu.memory_space<vmem>>) attributes {dimension_semantics = [#tpu.dimension_semantics<parallel>], iteration_bounds = array<i64: 1>, scalar_prefetch = 0 : i64, scratch_operands = 0 : i64, tpu.core_type = #tpu.core_type<tc>, window_params = [{transform_indices = @transform_0, window_bounds = array<i64: 16, 512>}, {pipeline_mode = #tpu.pipeline_mode<synchronous>, transform_indices = @transform_1, window_bounds = array<i64: 512, 128>}, {transform_indices = @transform_2, window_bounds = array<i64: 16, 128>}]} {
    %c0 = arith.constant 0 : index
    %c0_0 = arith.constant 0 : index
    %0 = vector.load %arg1[%c0, %c0_0] : memref<16x512xbf16, #tpu.memory_space<vmem>>, vector<16x512xbf16>
    %c0_1 = arith.constant 0 : index
    %c0_2 = arith.constant 0 : index
    %1 = vector.load %arg2[%c0_1, %c0_2] : memref<512x128xbf16, #tpu.memory_space<vmem>>, vector<512x128xbf16>
    %cst = arith.constant dense<0.000000e+00> : vector<16x128xf32>
    %2 = tpu.matmul %0, %1, %cst {dimension_numbers = #tpu.dot_dimension_numbers<[1], [0], [0], [1], [0, 0, 1, 1], [], []>} : vector<16x512xbf16>, vector<512x128xbf16>, vector<16x128xf32> -> vector<16x128xf32>
    %cst_3 = arith.constant 0.000000e+00 : f32
    %3 = vector.broadcast %cst_3 : f32 to vector<16x128xf32>
    %4 = arith.subf %3, %2 : vector<16x128xf32>
    %5 = math.exp %4 : vector<16x128xf32>
    %cst_4 = arith.constant 1.000000e+00 : f32
    %6 = vector.broadcast %cst_4 : f32 to vector<16x128xf32>
    %7 = arith.addf %6, %5 : vector<16x128xf32>
    %cst_5 = arith.constant 1.000000e+00 : f32
    %8 = vector.broadcast %cst_5 : f32 to vector<16x128xf32>
    %9 = arith.divf %8, %7 : vector<16x128xf32>
    %c0_6 = arith.constant 0 : index
    %c0_7 = arith.constant 0 : index
    %10 = vector.load %arg3[%c0_6, %c0_7] : memref<16x128xf32, #tpu.memory_space<vmem>>, vector<16x128xf32>
    tpu.vector_store %arg3[%c0_6, %c0_7], %9 {strides = array<i32>} : memref<16x128xf32, #tpu.memory_space<vmem>>, vector<16x128xf32>,
    return
  }
  func.func @transform_0(%arg0: i32) -> (i32, i32) {
    %c0_i32 = arith.constant 0 : i32
    %c0_i32_0 = arith.constant 0 : i32
    return %arg0, %c0_i32 : i32, i32
  }
  func.func @transform_1(%arg0: i32) -> (i32, i32) {
    %c0_i32 = arith.constant 0 : i32
    %c0_i32_0 = arith.constant 0 : i32
    %c0_i32_1 = arith.constant 0 : i32
    return %c0_i32, %c0_i32_0 : i32, i32
  }
  func.func @transform_2(%arg0: i32) -> (i32, i32) {
    %c0_i32 = arith.constant 0 : i32
    %c0_i32_0 = arith.constant 0 : i32
    return %arg0, %c0_i32 : i32, i32
  }
}

</mosaic_0001>

<llo_original>
// kernel: _lambda_.6
$region0: #{_lambda_.6}
  #allocation0 [shape = 'u32[]', space=smem, size = 0x4, offset = 0x4, fixed_abs, tag = 'smem constant byte address 0x4 - core index']
  #allocation1 [shape = 'u32[144,128]{1,0:T(1,128)}', space=vmem, size = 0x12000, scoped, tag = 'internal scratch']
  %s0 = inlined_call_operand.vmem [shape: bf16[512,128], index: 0, kind: input, shape index: {}]
  %s1 = inlined_call_operand.vmem [shape: bf16[128,128], index: 1, kind: input, shape index: {}]
  %s2 = inlined_call_operand.vmem [shape: bf16[512,128], index: 2, kind: output, shape index: {}]
  %s3 = sld [smem:[#allocation0]]
  $region41: #{_lambda_.6} parent=0
    _
  %s5 = ssub.s32 1, %s3
  %s6 = scalar_select 0, %s5, %s3
  loop: start=0, step=1, limit=18
  $region2: #{_lambda_.6} parent=0 // loop_pre_header
    _
  $region3: #{_lambda_.6} parent=0 // loop_header
    %s8 = sphi 0, %s12
    %p9 = scmp.ge.s32.totalorder %s8, 18
    %s18 = sphi 0, %s20
    %s21 = sphi 0, %s18
    %s22 = sphi 0, %s21
    %s38 = sphi 0, %s22
    %s42 = sphi 0, %s42
    %s44 = sphi 0, %s42
    %s45 = sphi 0, %s44
    %s59 = sphi 0, %s45
    %s65 = sphi 0, %s67
    %s68 = sphi 0, %s65
    %s69 = sphi 0, %s68
    %s85 = sphi 0, %s69
  $region4: #{_lambda_.6} parent=0 // loop_header_branch
    %11 = sbr.rel (%p9) target = $region8
  $region5: #{_lambda_.6} parent=0 // loop_body
    %s13 = ssub.s32 %s8, 1
    %s14 = ssub.s32 %s8, 2
    %s15 = sadd.s32 %s8, 1
    %s16 = ssub.s32 %s8, %s15
    %p17 = scmp.eq.s32.totalorder %s16, 0
    %s19 = sadd.s32 %s18, 1
    %s20 = scalar_select %p17, %s18, %s19
    %p23 = pneg %p17
    %p24 = scmp.eq.s32.totalorder %s8, 15
    %p25 = por %p23, %p24
    %p26 = scmp.ne.s32.totalorder %s18, %s21
    %p27 = scmp.eq.s32.totalorder %s8, 0
    %p28 = por %p26, %p27
    %p29 = scmp.ne.s32.totalorder %s18, %s21
    %p30 = scmp.eq.s32.totalorder %s13, 15
    %p31 = por %p29, %p30
    %p32 = scmp.ne.s32.totalorder %s21, %s22
    %p33 = scmp.eq.s32.totalorder %s13, 0
    %p34 = por %p32, %p33
    %p35 = scmp.ne.s32.totalorder %s21, %s22
    %p36 = scmp.eq.s32.totalorder %s14, 15
    %p37 = por %p35, %p36
    %p39 = scmp.ne.s32.totalorder %s22, %s38
    %p40 = scmp.eq.s32.totalorder %s14, 0
    %p41 = por %p39, %p40
    %s43 = sadd.s32 %s42, 1
    %p46 = scmp.eq.s32.totalorder %s8, 15
    %p47 = scmp.ne.s32.totalorder %s42, %s44
    %p48 = scmp.eq.s32.totalorder %s8, 0
    %p49 = por %p47, %p48
    %p50 = scmp.ne.s32.totalorder %s42, %s44
    %p51 = scmp.eq.s32.totalorder %s13, 15
    %p52 = por %p50, %p51
    %p53 = scmp.ne.s32.totalorder %s44, %s45
    %p54 = scmp.eq.s32.totalorder %s13, 0
    %p55 = por %p53, %p54
    %p56 = scmp.ne.s32.totalorder %s44, %s45
    %p57 = scmp.eq.s32.totalorder %s14, 15
    %p58 = por %p56, %p57
    %p60 = scmp.ne.s32.totalorder %s45, %s59
    %p61 = scmp.eq.s32.totalorder %s14, 0
    %p62 = por %p60, %p61
    %s63 = ssub.s32 %s8, %s15
    %p64 = scmp.eq.s32.totalorder %s63, 0
    %s66 = sadd.s32 %s65, 1
    %s67 = scalar_select %p64, %s65, %s66
    %p70 = pneg %p64
    %p71 = scmp.eq.s32.totalorder %s8, 15
    %p72 = por %p70, %p71
    %p73 = scmp.ne.s32.totalorder %s65, %s68
    %p74 = scmp.eq.s32.totalorder %s8, 0
    %p75 = por %p73, %p74
    %p76 = scmp.ne.s32.totalorder %s65, %s68
    %p77 = scmp.eq.s32.totalorder %s13, 15
    %p78 = por %p76, %p77
    %p79 = scmp.ne.s32.totalorder %s68, %s69
    %p80 = scmp.eq.s32.totalorder %s13, 0
    %p81 = por %p79, %p80
    %p82 = scmp.ne.s32.totalorder %s68, %s69
    %p83 = scmp.eq.s32.totalorder %s14, 15
    %p84 = por %p82, %p83
    %p86 = scmp.ne.s32.totalorder %s69, %s85
    %p87 = scmp.eq.s32.totalorder %s14, 0
    %p88 = por %p86, %p87
    %p89 = scmp.le.s32.totalorder 1, %s8
    %p90 = scmp.lt.s32.totalorder %s8, 17
    %p91 = pnand %p89, %p90
    %p92 = pneg %p91
    // Predicated region
    $region9: #{_lambda_.6} parent=5 // pred_check
      _
    $region10: #{_lambda_.6} parent=5 // pred_check_branch
      %94 = sbr.rel (%p91) target = $region12
    $region11: #{_lambda_.6} parent=5 // pred_region
      %s95 = ssub.s32 %s8, 1
      // Predicated region
      $region13: #{_lambda_.6} parent=11 // pred_check
        %p96 = pneg %p55
      $region14: #{_lambda_.6} parent=11 // pred_check_branch
        %98 = sbr.rel (%p96) target = $region16
      $region15: #{_lambda_.6} parent=11 // pred_region
        _
      $region16: #{_lambda_.6} parent=11 // pred_fallthru
        _
    $region12: #{_lambda_.6} parent=5 // pred_fallthru
      _
    %p99 = scmp.lt.s32.totalorder %s8, 16
    // Predicated region
    $region17: #{_lambda_.6} parent=5 // pred_check
      %p100 = pneg %p99
    $region18: #{_lambda_.6} parent=5 // pred_check_branch
      %102 = sbr.rel (%p100) target = $region20
    $region19: #{_lambda_.6} parent=5 // pred_region
      // Predicated region
      $region21: #{_lambda_.6} parent=19 // pred_check
        %p103 = pneg %p28
      $region22: #{_lambda_.6} parent=19 // pred_check_branch
        %105 = sbr.rel (%p103) target = $region24
      $region23: #{_lambda_.6} parent=19 // pred_region
        %s106 = smul.u32 4, %s8
        %p107 = scmp.lt.s32.totalorder %s106, 63
        %s108 = scalar_select %p107, %s106, 63
        %s109 = smul.addr %s108, 4
        %s110 = scalar_lea.vmem %s0, %s109
        %s111 = smul.u32 4, %s8
      $region24: #{_lambda_.6} parent=19 // pred_fallthru
        _
    $region20: #{_lambda_.6} parent=5 // pred_fallthru
      _
    %p112 = scmp.le.s32.totalorder 1, %s8
    %p113 = scmp.lt.s32.totalorder %s8, 17
    %p114 = pnand %p112, %p113
    %p115 = pneg %p114
    // Predicated region
    $region25: #{_lambda_.6} parent=5 // pred_check
      _
    $region26: #{_lambda_.6} parent=5 // pred_check_branch
      %117 = sbr.rel (%p114) target = $region28
    $region27: #{_lambda_.6} parent=5 // pred_region
      %s118 = ssub.s32 %s8, 1
      %s119 = smul.u32 4, %s13
      %p120 = scmp.lt.s32.totalorder %s119, 63
      %s121 = scalar_select %p120, %s119, 63
      %s122 = smul.addr %s121, 4
      %s123 = scalar_lea.vmem %s0, %s122
      %p124 = pneg %p34
      %p125 = pneg %p31
      %p126 = pneg %p55
      %p127 = pneg %p52
      %p128 = pneg %p81
      %p129 = pneg %p78
      %s130 = smul.u32 4, %s13
      %p131 = scmp.lt.s32.totalorder %s130, 63
      %s132 = scalar_select %p131, %s130, 63
      %s133 = smul.addr %s132, 4
      %s134 = scalar_lea.vmem %s2, %s133
      %s135 = smul.u32 4, %s13
      %p136 = scmp.lt.s32.totalorder %s135, 63
      %s137 = scalar_select %p136, %s135, 63
      %s138 = smul.addr %s137, 4
      %s139 = scalar_lea.vmem %s0, %s138
      %s140 = smul.u32 4, %s13
      %s141 = smul.u32 4, %s13
      %p142 = scmp.lt.s32.totalorder %s141, 63
      %s143 = scalar_select %p142, %s141, 63
      %s144 = smul.addr %s143, 4
      %s145 = scalar_lea.vmem %s2, %s144
      %s146 = smul.u32 4, %s13
      %v148 = vld [vmem:[%s139] sm:$0xf]
      %v149 = vld [vmem:[%s139 + $0x4] sm:$0xf]
      %v150 = vld [vmem:[%s139 + $0x8] sm:$0xf]
      %v151 = vld [vmem:[%s139 + $0xc] sm:$0xf]
      %v152 = vld [vmem:[%s1] sm:$0xf]
      %v153 = vld [vmem:[%s1 + $0x4] sm:$0xf]
      %v154 = vld [vmem:[%s1 + $0x8] sm:$0xf]
      %v155 = vld [vmem:[%s1 + $0xc] sm:$0xf]
      %v156 = vld [vmem:[%s1 + $0x10] sm:$0xf]
      %v157 = vld [vmem:[%s1 + $0x14] sm:$0xf]
      %v158 = vld [vmem:[%s1 + $0x18] sm:$0xf]
      %v159 = vld [vmem:[%s1 + $0x1c] sm:$0xf]
      %v160 = vld [vmem:[%s1 + $0x20] sm:$0xf]
      %v161 = vld [vmem:[%s1 + $0x24] sm:$0xf]
      %v162 = vld [vmem:[%s1 + $0x28] sm:$0xf]
      %v163 = vld [vmem:[%s1 + $0x2c] sm:$0xf]
      %v164 = vld [vmem:[%s1 + $0x30] sm:$0xf]
      %v165 = vld [vmem:[%s1 + $0x34] sm:$0xf]
      %v166 = vld [vmem:[%s1 + $0x38] sm:$0xf]
      %v167 = vld [vmem:[%s1 + $0x3c] sm:$0xf]
      %v172 = vunpack.c.l.b16 %v148
      %v173 = vunpack.c.l.b16 %v149
      %v174 = vunpack.c.l.b16 %v150
      %v175 = vunpack.c.l.b16 %v151
      %v176 = vpack.c.b16 %v173, %v172
      %v177 = vpack.c.b16 %v175, %v174
      %v196 = vunpack.c.l.b16 %v152
      %v197 = vunpack.c.l.b16 %v153
      %v198 = vunpack.c.l.b16 %v154
      %v199 = vunpack.c.l.b16 %v155
      %v200 = vunpack.c.l.b16 %v156
      %v201 = vunpack.c.l.b16 %v157
      %v202 = vunpack.c.l.b16 %v158
      %v203 = vunpack.c.l.b16 %v159
      %v204 = vunpack.c.l.b16 %v160
      %v205 = vunpack.c.l.b16 %v161
      %v206 = vunpack.c.l.b16 %v162
      %v207 = vunpack.c.l.b16 %v163
      %v208 = vunpack.c.l.b16 %v164
      %v209 = vunpack.c.l.b16 %v165
      %v210 = vunpack.c.l.b16 %v166
      %v211 = vunpack.c.l.b16 %v167
      %v212 = vpack.c.b16 %v197, %v196
      %v213 = vpack.c.b16 %v199, %v198
      %v214 = vpack.c.b16 %v201, %v200
      %v215 = vpack.c.b16 %v203, %v202
      %v216 = vpack.c.b16 %v205, %v204
      %v217 = vpack.c.b16 %v207, %v206
      %v218 = vpack.c.b16 %v209, %v208
      %v219 = vpack.c.b16 %v211, %v210
      %228 = vmatprep.subr.bf16.mxu0 0
      %229 = vmatpush1.bf16.msra.mxu0 %v212
      %230 = vmatprep.subr.bf16.mxu0 0
      %231 = vmatpush1.bf16.msra.mxu0 %v213
      %232 = vmatprep.subr.bf16.mxu0 0
      %233 = vmatpush1.bf16.msra.mxu0 %v214
      %234 = vmatprep.subr.bf16.mxu0 0
      %235 = vmatpush1.bf16.msra.mxu0 %v215
      %236 = vmatprep.subr.bf16.mxu0 0
      %237 = vmatpush1.bf16.msra.mxu0 %v216
      %238 = vmatprep.subr.bf16.mxu0 0
      %239 = vmatpush1.bf16.msra.mxu0 %v217
      %240 = vmatprep.subr.bf16.mxu0 0
      %241 = vmatpush1.bf16.msra.mxu0 %v218
      %242 = vmatprep.subr.bf16.mxu0 0
      %243 = vmatpush1.bf16.msra.mxu0 %v219
      %244 = vmatprep.subr.bf16.mxu0 0
      %245 = vmatpush1.bf16.msra.mxu0 0
      %246 = vmatprep.subr.bf16.mxu0 0
      %247 = vmatpush1.bf16.msra.mxu0 0
      %248 = vmatprep.subr.bf16.mxu0 0
      %249 = vmatpush1.bf16.msra.mxu0 0
      %250 = vmatprep.subr.bf16.mxu0 0
      %251 = vmatpush1.bf16.msra.mxu0 0
      %252 = vmatprep.subr.bf16.mxu0 0
      %253 = vmatpush1.bf16.msra.mxu0 0
      %254 = vmatprep.subr.bf16.mxu0 0
      %255 = vmatpush1.bf16.msra.mxu0 0
      %256 = vmatprep.subr.bf16.mxu0 0
      %257 = vmatpush1.bf16.msra.mxu0 0
      %258 = vmatprep.subr.bf16.mxu0 0
      %259 = vmatpush1.bf16.msra.mxu0 0
      %260 = vmatprep.mubr.bf16.mxu0 0
      %261 = vmatmul.mubr.bf16.gmra.mrb[0].mxu0 %v176
      %v262 = vpop.f32.mrb[0].mxu0
      %v263 = vadd.f32 0.0, %v262
      %v264 = vpop.f32.mrb[0].mxu0
      %v265 = vpop.f32.mrb[0].mxu0
      %v266 = vadd.f32 0.0, %v265
      %v267 = vpop.f32.mrb[0].mxu0
      %268 = vmatprep.mubr.bf16.mxu0 0
      %269 = vmatmul.mubr.bf16.gmra.mrb[0].mxu0 %v177
      %v270 = vpop.f32.mrb[0].mxu0
      %v271 = vadd.f32 0.0, %v270
      %v272 = vpop.f32.mrb[0].mxu0
      %v273 = vpop.f32.mrb[0].mxu0
      %v274 = vadd.f32 0.0, %v273
      %v275 = vpop.f32.mrb[0].mxu0
      %276 = vdwg.mxu0
      %vm277 = vcmp.ge.f32.partialorder %v263, 0.0
      %vm278 = vcmp.ge.f32.partialorder %v266, 0.0
      %vm279 = vcmp.ge.f32.partialorder %v271, 0.0
      %vm280 = vcmp.ge.f32.partialorder %v274, 0.0
      %v281 = vmul.f32 %v263, 0.2
      %v282 = vmul.f32 %v266, 0.2
      %v283 = vmul.f32 %v271, 0.2
      %v284 = vmul.f32 %v274, 0.2
      %v285 = vsel %vm277, %v263, %v281
      %v286 = vsel %vm278, %v266, %v282
      %v287 = vsel %vm279, %v271, %v283
      %v288 = vsel %vm280, %v274, %v284
      %v289 = vpack.c.bf16 %v286, %v285
      %v290 = vpack.c.bf16 %v288, %v287
      %v293 = vunpack.c.l.b16 %v289
      %v294 = vunpack.c.h.b16 %v289
      %v295 = vunpack.c.l.b16 %v290
      %v296 = vunpack.c.h.b16 %v290
      %v297 = vpack.c.b16 %v293, %v293
      %v298 = vpack.c.b16 %v294, %v294
      %v299 = vpack.c.b16 %v295, %v295
      %v300 = vpack.c.b16 %v296, %v296
      %305 = vst [vmem:[%s145] sm:$0xf] %v297
      %306 = vst [vmem:[%s145 + $0x4] sm:$0xf] %v298
      %307 = vst [vmem:[%s145 + $0x8] sm:$0xf] %v299
      %308 = vst [vmem:[%s145 + $0xc] sm:$0xf] %v300
      %s309 = smul.u32 4, %s13
      %p310 = scmp.lt.s32.totalorder %s309, 63
      %s311 = scalar_select %p310, %s309, 63
      %s312 = smul.addr %s311, 4
      %s313 = scalar_lea.vmem %s2, %s312
      // Predicated region
      $region29: #{_lambda_.6} parent=27 // pred_check
        %p314 = pneg %p78
      $region30: #{_lambda_.6} parent=27 // pred_check_branch
        %316 = sbr.rel (%p314) target = $region32
      $region31: #{_lambda_.6} parent=27 // pred_region
        %s317 = smul.u32 4, %s13
      $region32: #{_lambda_.6} parent=27 // pred_fallthru
        _
    $region28: #{_lambda_.6} parent=5 // pred_fallthru
      _
    %p318 = scmp.le.s32.totalorder 2, %s8
    // Predicated region
    $region33: #{_lambda_.6} parent=5 // pred_check
      %p319 = pneg %p318
    $region34: #{_lambda_.6} parent=5 // pred_check_branch
      %321 = sbr.rel (%p319) target = $region36
    $region35: #{_lambda_.6} parent=5 // pred_region
      %s322 = ssub.s32 %s8, 2
      // Predicated region
      $region37: #{_lambda_.6} parent=35 // pred_check
        %p323 = pneg %p84
      $region38: #{_lambda_.6} parent=35 // pred_check_branch
        %325 = sbr.rel (%p323) target = $region40
      $region39: #{_lambda_.6} parent=35 // pred_region
        %s326 = smul.u32 4, %s14
        %p327 = scmp.lt.s32.totalorder %s326, 63
        %s328 = scalar_select %p327, %s326, 63
        %s329 = smul.addr %s328, 4
        %s330 = scalar_lea.vmem %s2, %s329
      $region40: #{_lambda_.6} parent=35 // pred_fallthru
        _
    $region36: #{_lambda_.6} parent=5 // pred_fallthru
      _
  $region6: #{_lambda_.6} parent=0 // loop_footer
    %s12 = sadd.s32 1, %s8
  $region7: #{_lambda_.6} parent=0 // loop_footer_branch
    %7 = sbr.rel target = $region3
  $region8: #{_lambda_.6} parent=0 // loop_exit
    _

// kernel: _lambda_.7
$region0: #{_lambda_.7}
  #allocation0 [shape = 'u32[]', space=smem, size = 0x4, offset = 0x4, fixed_abs, tag = 'smem constant byte address 0x4 - core index']
  #allocation1 [shape = 'u32[144,128]{1,0:T(1,128)}', space=vmem, size = 0x12000, scoped, tag = 'internal scratch']
  %s0 = inlined_call_operand.vmem [shape: bf16[128,128], index: 0, kind: input, shape index: {}]
  %s1 = inlined_call_operand.vmem [shape: bf16[128,128], index: 1, kind: input, shape index: {}]
  %s2 = inlined_call_operand.vmem [shape: bf16[128,128], index: 2, kind: output, shape index: {0}]
  %s3 = inlined_call_operand.vmem [shape: f32[4,2,128], index: 3, kind: output, shape index: {1}]
  %4 = xla_tuple %s2, %s3
  %s5 = sld [smem:[#allocation0]]
  $region49: #{_lambda_.7} parent=0
    _
  %s7 = ssub.s32 1, %s5
  %s8 = scalar_select 0, %s7, %s5
  loop: start=0, step=1, limit=6
  $region2: #{_lambda_.7} parent=0 // loop_pre_header
    _
  $region3: #{_lambda_.7} parent=0 // loop_header
    %s10 = sphi 0, %s14
    %p11 = scmp.ge.s32.totalorder %s10, 6
    %s20 = sphi 0, %s22
    %s23 = sphi 0, %s20
    %s24 = sphi 0, %s23
    %s40 = sphi 0, %s24
    %s44 = sphi 0, %s44
    %s46 = sphi 0, %s44
    %s47 = sphi 0, %s46
    %s61 = sphi 0, %s47
    %s67 = sphi 0, %s69
    %s70 = sphi 0, %s67
    %s71 = sphi 0, %s70
    %s87 = sphi 0, %s71
    %s93 = sphi 0, %s95
    %s96 = sphi 0, %s93
    %s97 = sphi 0, %s96
    %s113 = sphi 0, %s97
  $region4: #{_lambda_.7} parent=0 // loop_header_branch
    %13 = sbr.rel (%p11) target = $region8
  $region5: #{_lambda_.7} parent=0 // loop_body
    %s15 = ssub.s32 %s10, 1
    %s16 = ssub.s32 %s10, 2
    %s17 = sadd.s32 %s10, 1
    %s18 = ssub.s32 %s10, %s17
    %p19 = scmp.eq.s32.totalorder %s18, 0
    %s21 = sadd.s32 %s20, 1
    %s22 = scalar_select %p19, %s20, %s21
    %p25 = pneg %p19
    %p26 = scmp.eq.s32.totalorder %s10, 3
    %p27 = por %p25, %p26
    %p28 = scmp.ne.s32.totalorder %s20, %s23
    %p29 = scmp.eq.s32.totalorder %s10, 0
    %p30 = por %p28, %p29
    %p31 = scmp.ne.s32.totalorder %s20, %s23
    %p32 = scmp.eq.s32.totalorder %s15, 3
    %p33 = por %p31, %p32
    %p34 = scmp.ne.s32.totalorder %s23, %s24
    %p35 = scmp.eq.s32.totalorder %s15, 0
    %p36 = por %p34, %p35
    %p37 = scmp.ne.s32.totalorder %s23, %s24
    %p38 = scmp.eq.s32.totalorder %s16, 3
    %p39 = por %p37, %p38
    %p41 = scmp.ne.s32.totalorder %s24, %s40
    %p42 = scmp.eq.s32.totalorder %s16, 0
    %p43 = por %p41, %p42
    %s45 = sadd.s32 %s44, 1
    %p48 = scmp.eq.s32.totalorder %s10, 3
    %p49 = scmp.ne.s32.totalorder %s44, %s46
    %p50 = scmp.eq.s32.totalorder %s10, 0
    %p51 = por %p49, %p50
    %p52 = scmp.ne.s32.totalorder %s44, %s46
    %p53 = scmp.eq.s32.totalorder %s15, 3
    %p54 = por %p52, %p53
    %p55 = scmp.ne.s32.totalorder %s46, %s47
    %p56 = scmp.eq.s32.totalorder %s15, 0
    %p57 = por %p55, %p56
    %p58 = scmp.ne.s32.totalorder %s46, %s47
    %p59 = scmp.eq.s32.totalorder %s16, 3
    %p60 = por %p58, %p59
    %p62 = scmp.ne.s32.totalorder %s47, %s61
    %p63 = scmp.eq.s32.totalorder %s16, 0
    %p64 = por %p62, %p63
    %s65 = ssub.s32 %s10, %s17
    %p66 = scmp.eq.s32.totalorder %s65, 0
    %s68 = sadd.s32 %s67, 1
    %s69 = scalar_select %p66, %s67, %s68
    %p72 = pneg %p66
    %p73 = scmp.eq.s32.totalorder %s10, 3
    %p74 = por %p72, %p73
    %p75 = scmp.ne.s32.totalorder %s67, %s70
    %p76 = scmp.eq.s32.totalorder %s10, 0
    %p77 = por %p75, %p76
    %p78 = scmp.ne.s32.totalorder %s67, %s70
    %p79 = scmp.eq.s32.totalorder %s15, 3
    %p80 = por %p78, %p79
    %p81 = scmp.ne.s32.totalorder %s70, %s71
    %p82 = scmp.eq.s32.totalorder %s15, 0
    %p83 = por %p81, %p82
    %p84 = scmp.ne.s32.totalorder %s70, %s71
    %p85 = scmp.eq.s32.totalorder %s16, 3
    %p86 = por %p84, %p85
    %p88 = scmp.ne.s32.totalorder %s71, %s87
    %p89 = scmp.eq.s32.totalorder %s16, 0
    %p90 = por %p88, %p89
    %s91 = ssub.s32 %s10, %s17
    %p92 = scmp.eq.s32.totalorder %s91, 0
    %s94 = sadd.s32 %s93, 1
    %s95 = scalar_select %p92, %s93, %s94
    %p98 = pneg %p92
    %p99 = scmp.eq.s32.totalorder %s10, 3
    %p100 = por %p98, %p99
    %p101 = scmp.ne.s32.totalorder %s93, %s96
    %p102 = scmp.eq.s32.totalorder %s10, 0
    %p103 = por %p101, %p102
    %p104 = scmp.ne.s32.totalorder %s93, %s96
    %p105 = scmp.eq.s32.totalorder %s15, 3
    %p106 = por %p104, %p105
    %p107 = scmp.ne.s32.totalorder %s96, %s97
    %p108 = scmp.eq.s32.totalorder %s15, 0
    %p109 = por %p107, %p108
    %p110 = scmp.ne.s32.totalorder %s96, %s97
    %p111 = scmp.eq.s32.totalorder %s16, 3
    %p112 = por %p110, %p111
    %p114 = scmp.ne.s32.totalorder %s97, %s113
    %p115 = scmp.eq.s32.totalorder %s16, 0
    %p116 = por %p114, %p115
    %p117 = scmp.le.s32.totalorder 1, %s10
    %p118 = scmp.lt.s32.totalorder %s10, 5
    %p119 = pnand %p117, %p118
    %p120 = pneg %p119
    // Predicated region
    $region9: #{_lambda_.7} parent=5 // pred_check
      _
    $region10: #{_lambda_.7} parent=5 // pred_check_branch
      %122 = sbr.rel (%p119) target = $region12
    $region11: #{_lambda_.7} parent=5 // pred_region
      %s123 = ssub.s32 %s10, 1
      // Predicated region
      $region13: #{_lambda_.7} parent=11 // pred_check
        %p124 = pneg %p57
      $region14: #{_lambda_.7} parent=11 // pred_check_branch
        %126 = sbr.rel (%p124) target = $region16
      $region15: #{_lambda_.7} parent=11 // pred_region
        _
      $region16: #{_lambda_.7} parent=11 // pred_fallthru
        _
    $region12: #{_lambda_.7} parent=5 // pred_fallthru
      _
    %p127 = scmp.lt.s32.totalorder %s10, 4
    // Predicated region
    $region17: #{_lambda_.7} parent=5 // pred_check
      %p128 = pneg %p127
    $region18: #{_lambda_.7} parent=5 // pred_check_branch
      %130 = sbr.rel (%p128) target = $region20
    $region19: #{_lambda_.7} parent=5 // pred_region
      // Predicated region
      $region21: #{_lambda_.7} parent=19 // pred_check
        %p131 = pneg %p30
      $region22: #{_lambda_.7} parent=19 // pred_check_branch
        %133 = sbr.rel (%p131) target = $region24
      $region23: #{_lambda_.7} parent=19 // pred_region
        %s134 = smul.u32 4, %s10
        %p135 = scmp.lt.s32.totalorder %s134, 15
        %s136 = scalar_select %p135, %s134, 15
        %s137 = smul.addr %s136, 4
        %s138 = scalar_lea.vmem %s0, %s137
        %s139 = smul.u32 4, %s10
      $region24: #{_lambda_.7} parent=19 // pred_fallthru
        _
    $region20: #{_lambda_.7} parent=5 // pred_fallthru
      _
    %p140 = scmp.le.s32.totalorder 1, %s10
    %p141 = scmp.lt.s32.totalorder %s10, 5
    %p142 = pnand %p140, %p141
    %p143 = pneg %p142
    // Predicated region
    $region25: #{_lambda_.7} parent=5 // pred_check
      _
    $region26: #{_lambda_.7} parent=5 // pred_check_branch
      %145 = sbr.rel (%p142) target = $region28
    $region27: #{_lambda_.7} parent=5 // pred_region
      %s146 = ssub.s32 %s10, 1
      %s147 = smul.u32 4, %s15
      %p148 = scmp.lt.s32.totalorder %s147, 15
      %s149 = scalar_select %p148, %s147, 15
      %s150 = smul.addr %s149, 4
      %s151 = scalar_lea.vmem %s0, %s150
      %p152 = pneg %p36
      %p153 = pneg %p33
      %p154 = pneg %p57
      %p155 = pneg %p54
      %p156 = pneg %p83
      %p157 = pneg %p80
      %s158 = smul.u32 4, %s15
      %p159 = scmp.lt.s32.totalorder %s158, 15
      %s160 = scalar_select %p159, %s158, 15
      %s161 = smul.addr %s160, 4
      %s162 = scalar_lea.vmem %s2, %s161
      %p163 = pneg %p109
      %p164 = pneg %p106
      %p165 = scmp.lt.s32.totalorder %s15, 3
      %s166 = scalar_select %p165, %s15, 3
      %s167 = smul.addr %s166, 2
      %s168 = scalar_lea.vmem %s3, %s167
      %s169 = smul.u32 4, %s15
      %p170 = scmp.lt.s32.totalorder %s169, 15
      %s171 = scalar_select %p170, %s169, 15
      %s172 = smul.addr %s171, 4
      %s173 = scalar_lea.vmem %s0, %s172
      %s174 = smul.u32 4, %s15
      %s175 = smul.u32 4, %s15
      %p176 = scmp.lt.s32.totalorder %s175, 15
      %s177 = scalar_select %p176, %s175, 15
      %s178 = smul.addr %s177, 4
      %s179 = scalar_lea.vmem %s2, %s178
      %s180 = smul.u32 4, %s15
      %p181 = scmp.lt.s32.totalorder %s15, 3
      %s182 = scalar_select %p181, %s15, 3
      %s183 = smul.addr %s182, 2
      %s184 = scalar_lea.vmem %s3, %s183
      %v186 = vld [vmem:[%s173] sm:$0xf]
      %v187 = vld [vmem:[%s173 + $0x4] sm:$0xf]
      %v188 = vld [vmem:[%s173 + $0x8] sm:$0xf]
      %v189 = vld [vmem:[%s173 + $0xc] sm:$0xf]
      %v190 = vld [vmem:[%s1] sm:$0xf]
      %v191 = vld [vmem:[%s1 + $0x4] sm:$0xf]
      %v192 = vld [vmem:[%s1 + $0x8] sm:$0xf]
      %v193 = vld [vmem:[%s1 + $0xc] sm:$0xf]
      %v194 = vld [vmem:[%s1 + $0x10] sm:$0xf]
      %v195 = vld [vmem:[%s1 + $0x14] sm:$0xf]
      %v196 = vld [vmem:[%s1 + $0x18] sm:$0xf]
      %v197 = vld [vmem:[%s1 + $0x1c] sm:$0xf]
      %v198 = vld [vmem:[%s1 + $0x20] sm:$0xf]
      %v199 = vld [vmem:[%s1 + $0x24] sm:$0xf]
      %v200 = vld [vmem:[%s1 + $0x28] sm:$0xf]
      %v201 = vld [vmem:[%s1 + $0x2c] sm:$0xf]
      %v202 = vld [vmem:[%s1 + $0x30] sm:$0xf]
      %v203 = vld [vmem:[%s1 + $0x34] sm:$0xf]
      %v204 = vld [vmem:[%s1 + $0x38] sm:$0xf]
      %v205 = vld [vmem:[%s1 + $0x3c] sm:$0xf]
      %v210 = vunpack.c.l.b16 %v186
      %v211 = vunpack.c.l.b16 %v187
      %v212 = vunpack.c.l.b16 %v188
      %v213 = vunpack.c.l.b16 %v189
      %v214 = vpack.c.b16 %v211, %v210
      %v215 = vpack.c.b16 %v213, %v212
      %v234 = vunpack.c.l.b16 %v190
      %v235 = vunpack.c.l.b16 %v191
      %v236 = vunpack.c.l.b16 %v192
      %v237 = vunpack.c.l.b16 %v193
      %v238 = vunpack.c.l.b16 %v194
      %v239 = vunpack.c.l.b16 %v195
      %v240 = vunpack.c.l.b16 %v196
      %v241 = vunpack.c.l.b16 %v197
      %v242 = vunpack.c.l.b16 %v198
      %v243 = vunpack.c.l.b16 %v199
      %v244 = vunpack.c.l.b16 %v200
      %v245 = vunpack.c.l.b16 %v201
      %v246 = vunpack.c.l.b16 %v202
      %v247 = vunpack.c.l.b16 %v203
      %v248 = vunpack.c.l.b16 %v204
      %v249 = vunpack.c.l.b16 %v205
      %v250 = vpack.c.b16 %v235, %v234
      %v251 = vpack.c.b16 %v237, %v236
      %v252 = vpack.c.b16 %v239, %v238
      %v253 = vpack.c.b16 %v241, %v240
      %v254 = vpack.c.b16 %v243, %v242
      %v255 = vpack.c.b16 %v245, %v244
      %v256 = vpack.c.b16 %v247, %v246
      %v257 = vpack.c.b16 %v249, %v248
      %266 = vmatprep.subr.bf16.mxu0 0
      %267 = vmatpush1.bf16.msra.mxu0 %v250
      %268 = vmatprep.subr.bf16.mxu0 0
      %269 = vmatpush1.bf16.msra.mxu0 %v251
      %270 = vmatprep.subr.bf16.mxu0 0
      %271 = vmatpush1.bf16.msra.mxu0 %v252
      %272 = vmatprep.subr.bf16.mxu0 0
      %273 = vmatpush1.bf16.msra.mxu0 %v253
      %274 = vmatprep.subr.bf16.mxu0 0
      %275 = vmatpush1.bf16.msra.mxu0 %v254
      %276 = vmatprep.subr.bf16.mxu0 0
      %277 = vmatpush1.bf16.msra.mxu0 %v255
      %278 = vmatprep.subr.bf16.mxu0 0
      %279 = vmatpush1.bf16.msra.mxu0 %v256
      %280 = vmatprep.subr.bf16.mxu0 0
      %281 = vmatpush1.bf16.msra.mxu0 %v257
      %282 = vmatprep.subr.bf16.mxu0 0
      %283 = vmatpush1.bf16.msra.mxu0 0
      %284 = vmatprep.subr.bf16.mxu0 0
      %285 = vmatpush1.bf16.msra.mxu0 0
      %286 = vmatprep.subr.bf16.mxu0 0
      %287 = vmatpush1.bf16.msra.mxu0 0
      %288 = vmatprep.subr.bf16.mxu0 0
      %289 = vmatpush1.bf16.msra.mxu0 0
      %290 = vmatprep.subr.bf16.mxu0 0
      %291 = vmatpush1.bf16.msra.mxu0 0
      %292 = vmatprep.subr.bf16.mxu0 0
      %293 = vmatpush1.bf16.msra.mxu0 0
      %294 = vmatprep.subr.bf16.mxu0 0
      %295 = vmatpush1.bf16.msra.mxu0 0
      %296 = vmatprep.subr.bf16.mxu0 0
      %297 = vmatpush1.bf16.msra.mxu0 0
      %298 = vmatprep.mubr.bf16.mxu0 0
      %299 = vmatmul.mubr.bf16.gmra.mrb[0].mxu0 %v214
      %v300 = vpop.f32.mrb[0].mxu0
      %v301 = vadd.f32 0.0, %v300
      %v302 = vpop.f32.mrb[0].mxu0
      %v303 = vpop.f32.mrb[0].mxu0
      %v304 = vadd.f32 0.0, %v303
      %v305 = vpop.f32.mrb[0].mxu0
      %306 = vmatprep.mubr.bf16.mxu0 0
      %307 = vmatmul.mubr.bf16.gmra.mrb[0].mxu0 %v215
      %v308 = vpop.f32.mrb[0].mxu0
      %v309 = vadd.f32 0.0, %v308
      %v310 = vpop.f32.mrb[0].mxu0
      %v311 = vpop.f32.mrb[0].mxu0
      %v312 = vadd.f32 0.0, %v311
      %v313 = vpop.f32.mrb[0].mxu0
      %314 = vdwg.mxu0
      %v315 = vpack.c.bf16 %v304, %v301
      %v316 = vpack.c.bf16 %v312, %v309
      %v319 = vunpack.c.l.b16 %v315
      %v320 = vunpack.c.h.b16 %v315
      %v321 = vunpack.c.l.b16 %v316
      %v322 = vunpack.c.h.b16 %v316
      %v323 = vpack.c.b16 %v319, %v319
      %v324 = vpack.c.b16 %v320, %v320
      %v325 = vpack.c.b16 %v321, %v321
      %v326 = vpack.c.b16 %v322, %v322
      %331 = vst [vmem:[%s179] sm:$0xf] %v323
      %332 = vst [vmem:[%s179 + $0x4] sm:$0xf] %v324
      %333 = vst [vmem:[%s179 + $0x8] sm:$0xf] %v325
      %334 = vst [vmem:[%s179 + $0xc] sm:$0xf] %v326
      %v335 = vadd.f32 %v301, %v304
      %v336 = vadd.f32 %v335, %v309
      %v337 = vadd.f32 %v336, %v312
      %v338 = vrot.slane %v337, 4
      %v339 = vadd.f32 %v337, %v338
      %v340 = vrot.slane %v339, 2
      %v341 = vadd.f32 %v339, %v340
      %v342 = vrot.slane %v341, 1
      %v343 = vadd.f32 %v341, %v342
      %v344 = vmul.f32 %v301, %v301
      %v345 = vmul.f32 %v304, %v304
      %v346 = vmul.f32 %v309, %v309
      %v347 = vmul.f32 %v312, %v312
      %v348 = vadd.f32 %v344, %v345
      %v349 = vadd.f32 %v348, %v346
      %v350 = vadd.f32 %v349, %v347
      %v351 = vrot.slane %v350, 4
      %v352 = vadd.f32 %v350, %v351
      %v353 = vrot.slane %v352, 2
      %v354 = vadd.f32 %v352, %v353
      %v355 = vrot.slane %v354, 1
      %v356 = vadd.f32 %v354, %v355
      %vm357 = vcmask 1040384
      %v358 = vsel %vm357, %v343, %v356
      %359 = vst [vmem:[%s184] sm:$0x3] %v358
      %s360 = smul.u32 4, %s15
      %p361 = scmp.lt.s32.totalorder %s360, 15
      %s362 = scalar_select %p361, %s360, 15
      %s363 = smul.addr %s362, 4
      %s364 = scalar_lea.vmem %s2, %s363
      %p365 = scmp.lt.s32.totalorder %s15, 3
      %s366 = scalar_select %p365, %s15, 3
      %s367 = smul.addr %s366, 2
      %s368 = scalar_lea.vmem %s3, %s367
      // Predicated region
      $region29: #{_lambda_.7} parent=27 // pred_check
        %p369 = pneg %p80
      $region30: #{_lambda_.7} parent=27 // pred_check_branch
        %371 = sbr.rel (%p369) target = $region32
      $region31: #{_lambda_.7} parent=27 // pred_region
        %s372 = smul.u32 4, %s15
      $region32: #{_lambda_.7} parent=27 // pred_fallthru
        _
      // Predicated region
      $region33: #{_lambda_.7} parent=27 // pred_check
        %p373 = pneg %p106
      $region34: #{_lambda_.7} parent=27 // pred_check_branch
        %375 = sbr.rel (%p373) target = $region36
      $region35: #{_lambda_.7} parent=27 // pred_region
        _
      $region36: #{_lambda_.7} parent=27 // pred_fallthru
        _
    $region28: #{_lambda_.7} parent=5 // pred_fallthru
      _
    %p376 = scmp.le.s32.totalorder 2, %s10
    // Predicated region
    $region37: #{_lambda_.7} parent=5 // pred_check
      %p377 = pneg %p376
    $region38: #{_lambda_.7} parent=5 // pred_check_branch
      %379 = sbr.rel (%p377) target = $region40
    $region39: #{_lambda_.7} parent=5 // pred_region
      %s380 = ssub.s32 %s10, 2
      // Predicated region
      $region41: #{_lambda_.7} parent=39 // pred_check
        %p381 = pneg %p86
      $region42: #{_lambda_.7} parent=39 // pred_check_branch
        %383 = sbr.rel (%p381) target = $region44
      $region43: #{_lambda_.7} parent=39 // pred_region
        %s384 = smul.u32 4, %s16
        %p385 = scmp.lt.s32.totalorder %s384, 15
        %s386 = scalar_select %p385, %s384, 15
        %s387 = smul.addr %s386, 4
        %s388 = scalar_lea.vmem %s2, %s387
      $region44: #{_lambda_.7} parent=39 // pred_fallthru
        _
      // Predicated region
      $region45: #{_lambda_.7} parent=39 // pred_check
        %p389 = pneg %p112
      $region46: #{_lambda_.7} parent=39 // pred_check_branch
        %391 = sbr.rel (%p389) target = $region48
      $region47: #{_lambda_.7} parent=39 // pred_region
        %p392 = scmp.lt.s32.totalorder %s16, 3
        %s393 = scalar_select %p392, %s16, 3
        %s394 = smul.addr %s393, 2
        %s395 = scalar_lea.vmem %s3, %s394
      $region48: #{_lambda_.7} parent=39 // pred_fallthru
        _
    $region40: #{_lambda_.7} parent=5 // pred_fallthru
      _
  $region6: #{_lambda_.7} parent=0 // loop_footer
    %s14 = sadd.s32 1, %s10
  $region7: #{_lambda_.7} parent=0 // loop_footer_branch
    %9 = sbr.rel target = $region3
  $region8: #{_lambda_.7} parent=0 // loop_exit
    _

// kernel: _lambda_.8
$region0: #{_lambda_.8}
  #allocation0 [shape = 'u32[]', space=smem, size = 0x4, offset = 0x4, fixed_abs, tag = 'smem constant byte address 0x4 - core index']
  #allocation1 [shape = 'u32[144,128]{1,0:T(1,128)}', space=vmem, size = 0x12000, scoped, tag = 'internal scratch']
  %s0 = inlined_call_operand.vmem [shape: bf16[128,128], index: 0, kind: input, shape index: {}, may-alias: {0,3}]
  %s1 = inlined_call_operand.vmem [shape: f32[1,128], index: 1, kind: input, shape index: {}]
  %s2 = inlined_call_operand.vmem [shape: f32[1,128], index: 2, kind: input, shape index: {}]
  %s3 = inlined_call_operand.vmem [shape: bf16[128,128], index: 3, kind: output, shape index: {}, may-alias: {0,3}]
  %s4 = sld [smem:[#allocation0]]
  $region45: #{_lambda_.8} parent=0
    _
  %s6 = ssub.s32 1, %s4
  %s7 = scalar_select 0, %s6, %s4
  loop: start=0, step=1, limit=4
  $region2: #{_lambda_.8} parent=0 // loop_pre_header
    _
  $region3: #{_lambda_.8} parent=0 // loop_header
    %s9 = sphi 0, %s13
    %p10 = scmp.ge.s32.totalorder %s9, 4
    %s19 = sphi 0, %s21
    %s22 = sphi 0, %s19
    %s23 = sphi 0, %s22
    %s39 = sphi 0, %s23
    %s43 = sphi 0, %s43
    %s45 = sphi 0, %s43
    %s46 = sphi 0, %s45
    %s60 = sphi 0, %s46
    %s64 = sphi 0, %s64
    %s66 = sphi 0, %s64
    %s67 = sphi 0, %s66
    %s81 = sphi 0, %s67
    %s87 = sphi 0, %s89
    %s90 = sphi 0, %s87
    %s91 = sphi 0, %s90
    %s107 = sphi 0, %s91
  $region4: #{_lambda_.8} parent=0 // loop_header_branch
    %12 = sbr.rel (%p10) target = $region8
  $region5: #{_lambda_.8} parent=0 // loop_body
    %s14 = ssub.s32 %s9, 1
    %s15 = ssub.s32 %s9, 2
    %s16 = sadd.s32 %s9, 1
    %s17 = ssub.s32 %s9, %s16
    %p18 = scmp.eq.s32.totalorder %s17, 0
    %s20 = sadd.s32 %s19, 1
    %s21 = scalar_select %p18, %s19, %s20
    %p24 = pneg %p18
    %p25 = scmp.eq.s32.totalorder %s9, 1
    %p26 = por %p24, %p25
    %p27 = scmp.ne.s32.totalorder %s19, %s22
    %p28 = scmp.eq.s32.totalorder %s9, 0
    %p29 = por %p27, %p28
    %p30 = scmp.ne.s32.totalorder %s19, %s22
    %p31 = scmp.eq.s32.totalorder %s14, 1
    %p32 = por %p30, %p31
    %p33 = scmp.ne.s32.totalorder %s22, %s23
    %p34 = scmp.eq.s32.totalorder %s14, 0
    %p35 = por %p33, %p34
    %p36 = scmp.ne.s32.totalorder %s22, %s23
    %p37 = scmp.eq.s32.totalorder %s15, 1
    %p38 = por %p36, %p37
    %p40 = scmp.ne.s32.totalorder %s23, %s39
    %p41 = scmp.eq.s32.totalorder %s15, 0
    %p42 = por %p40, %p41
    %s44 = sadd.s32 %s43, 1
    %p47 = scmp.eq.s32.totalorder %s9, 1
    %p48 = scmp.ne.s32.totalorder %s43, %s45
    %p49 = scmp.eq.s32.totalorder %s9, 0
    %p50 = por %p48, %p49
    %p51 = scmp.ne.s32.totalorder %s43, %s45
    %p52 = scmp.eq.s32.totalorder %s14, 1
    %p53 = por %p51, %p52
    %p54 = scmp.ne.s32.totalorder %s45, %s46
    %p55 = scmp.eq.s32.totalorder %s14, 0
    %p56 = por %p54, %p55
    %p57 = scmp.ne.s32.totalorder %s45, %s46
    %p58 = scmp.eq.s32.totalorder %s15, 1
    %p59 = por %p57, %p58
    %p61 = scmp.ne.s32.totalorder %s46, %s60
    %p62 = scmp.eq.s32.totalorder %s15, 0
    %p63 = por %p61, %p62
    %s65 = sadd.s32 %s64, 1
    %p68 = scmp.eq.s32.totalorder %s9, 1
    %p69 = scmp.ne.s32.totalorder %s64, %s66
    %p70 = scmp.eq.s32.totalorder %s9, 0
    %p71 = por %p69, %p70
    %p72 = scmp.ne.s32.totalorder %s64, %s66
    %p73 = scmp.eq.s32.totalorder %s14, 1
    %p74 = por %p72, %p73
    %p75 = scmp.ne.s32.totalorder %s66, %s67
    %p76 = scmp.eq.s32.totalorder %s14, 0
    %p77 = por %p75, %p76
    %p78 = scmp.ne.s32.totalorder %s66, %s67
    %p79 = scmp.eq.s32.totalorder %s15, 1
    %p80 = por %p78, %p79
    %p82 = scmp.ne.s32.totalorder %s67, %s81
    %p83 = scmp.eq.s32.totalorder %s15, 0
    %p84 = por %p82, %p83
    %s85 = ssub.s32 %s9, %s16
    %p86 = scmp.eq.s32.totalorder %s85, 0
    %s88 = sadd.s32 %s87, 1
    %s89 = scalar_select %p86, %s87, %s88
    %p92 = pneg %p86
    %p93 = scmp.eq.s32.totalorder %s9, 1
    %p94 = por %p92, %p93
    %p95 = scmp.ne.s32.totalorder %s87, %s90
    %p96 = scmp.eq.s32.totalorder %s9, 0
    %p97 = por %p95, %p96
    %p98 = scmp.ne.s32.totalorder %s87, %s90
    %p99 = scmp.eq.s32.totalorder %s14, 1
    %p100 = por %p98, %p99
    %p101 = scmp.ne.s32.totalorder %s90, %s91
    %p102 = scmp.eq.s32.totalorder %s14, 0
    %p103 = por %p101, %p102
    %p104 = scmp.ne.s32.totalorder %s90, %s91
    %p105 = scmp.eq.s32.totalorder %s15, 1
    %p106 = por %p104, %p105
    %p108 = scmp.ne.s32.totalorder %s91, %s107
    %p109 = scmp.eq.s32.totalorder %s15, 0
    %p110 = por %p108, %p109
    %p111 = scmp.le.s32.totalorder 1, %s9
    %p112 = scmp.lt.s32.totalorder %s9, 3
    %p113 = pnand %p111, %p112
    %p114 = pneg %p113
    // Predicated region
    $region9: #{_lambda_.8} parent=5 // pred_check
      _
    $region10: #{_lambda_.8} parent=5 // pred_check_branch
      %116 = sbr.rel (%p113) target = $region12
    $region11: #{_lambda_.8} parent=5 // pred_region
      %s117 = ssub.s32 %s9, 1
      // Predicated region
      $region13: #{_lambda_.8} parent=11 // pred_check
        %p118 = pneg %p56
      $region14: #{_lambda_.8} parent=11 // pred_check_branch
        %120 = sbr.rel (%p118) target = $region16
      $region15: #{_lambda_.8} parent=11 // pred_region
        _
      $region16: #{_lambda_.8} parent=11 // pred_fallthru
        _
      // Predicated region
      $region17: #{_lambda_.8} parent=11 // pred_check
        %p121 = pneg %p77
      $region18: #{_lambda_.8} parent=11 // pred_check_branch
        %123 = sbr.rel (%p121) target = $region20
      $region19: #{_lambda_.8} parent=11 // pred_region
        _
      $region20: #{_lambda_.8} parent=11 // pred_fallthru
        _
    $region12: #{_lambda_.8} parent=5 // pred_fallthru
      _
    %p124 = scmp.lt.s32.totalorder %s9, 2
    // Predicated region
    $region21: #{_lambda_.8} parent=5 // pred_check
      %p125 = pneg %p124
    $region22: #{_lambda_.8} parent=5 // pred_check_branch
      %127 = sbr.rel (%p125) target = $region24
    $region23: #{_lambda_.8} parent=5 // pred_region
      // Predicated region
      $region25: #{_lambda_.8} parent=23 // pred_check
        %p128 = pneg %p29
      $region26: #{_lambda_.8} parent=23 // pred_check_branch
        %130 = sbr.rel (%p128) target = $region28
      $region27: #{_lambda_.8} parent=23 // pred_region
        %s131 = smul.u32 8, %s9
        %p132 = scmp.lt.s32.totalorder %s131, 15
        %s133 = scalar_select %p132, %s131, 15
        %s134 = smul.addr %s133, 4
        %s135 = scalar_lea.vmem %s0, %s134
        %s136 = smul.u32 8, %s9
      $region28: #{_lambda_.8} parent=23 // pred_fallthru
        _
    $region24: #{_lambda_.8} parent=5 // pred_fallthru
      _
    %p137 = scmp.le.s32.totalorder 1, %s9
    %p138 = scmp.lt.s32.totalorder %s9, 3
    %p139 = pnand %p137, %p138
    %p140 = pneg %p139
    // Predicated region
    $region29: #{_lambda_.8} parent=5 // pred_check
      _
    $region30: #{_lambda_.8} parent=5 // pred_check_branch
      %142 = sbr.rel (%p139) target = $region32
    $region31: #{_lambda_.8} parent=5 // pred_region
      %s143 = ssub.s32 %s9, 1
      %s144 = smul.u32 8, %s14
      %p145 = scmp.lt.s32.totalorder %s144, 15
      %s146 = scalar_select %p145, %s144, 15
      %s147 = smul.addr %s146, 4
      %s148 = scalar_lea.vmem %s0, %s147
      %p149 = pneg %p35
      %p150 = pneg %p32
      %p151 = pneg %p56
      %p152 = pneg %p53
      %p153 = pneg %p77
      %p154 = pneg %p74
      %p155 = pneg %p103
      %p156 = pneg %p100
      %s157 = smul.u32 8, %s14
      %p158 = scmp.lt.s32.totalorder %s157, 15
      %s159 = scalar_select %p158, %s157, 15
      %s160 = smul.addr %s159, 4
      %s161 = scalar_lea.vmem %s3, %s160
      %s162 = smul.u32 8, %s14
      %p163 = scmp.lt.s32.totalorder %s162, 15
      %s164 = scalar_select %p163, %s162, 15
      %s165 = smul.addr %s164, 4
      %s166 = scalar_lea.vmem %s0, %s165
      %s167 = smul.u32 8, %s14
      %s168 = smul.u32 8, %s14
      %p169 = scmp.lt.s32.totalorder %s168, 15
      %s170 = scalar_select %p169, %s168, 15
      %s171 = smul.addr %s170, 4
      %s172 = scalar_lea.vmem %s3, %s171
      %s173 = smul.u32 8, %s14
      %v174 = vld [vmem:[%s166] sm:$0xf]
      %v175 = vld [vmem:[%s166 + $0x4] sm:$0xf]
      %v176 = vld [vmem:[%s166 + $0x8] sm:$0xf]
      %v177 = vld [vmem:[%s166 + $0xc] sm:$0xf]
      %v178 = vld [vmem:[%s166 + $0x10] sm:$0xf]
      %v179 = vld [vmem:[%s166 + $0x14] sm:$0xf]
      %v180 = vld [vmem:[%s166 + $0x18] sm:$0xf]
      %v181 = vld [vmem:[%s166 + $0x1c] sm:$0xf]
      %v182 = vunpack.c.l.bf16 %v174
      %v183 = vunpack.c.l.bf16 %v175
      %v184 = vunpack.c.l.bf16 %v176
      %v185 = vunpack.c.l.bf16 %v177
      %v186 = vunpack.c.l.bf16 %v178
      %v187 = vunpack.c.l.bf16 %v179
      %v188 = vunpack.c.l.bf16 %v180
      %v189 = vunpack.c.l.bf16 %v181
      %v190 = vld [vmem:[%s1] sm:$0x1]
      %v192 = vlaneseq
      %v193 = vshrl.u32 %v192, 7
      %v194 = vsub.s32 0, %v193
      %v195 = vrot.slane %v190, %v194
      %v197 = vmul.f32 %v182, %v195
      %v198 = vmul.f32 %v183, %v195
      %v199 = vmul.f32 %v184, %v195
      %v200 = vmul.f32 %v185, %v195
      %v201 = vmul.f32 %v186, %v195
      %v202 = vmul.f32 %v187, %v195
      %v203 = vmul.f32 %v188, %v195
      %v204 = vmul.f32 %v189, %v195
      %v205 = vld [vmem:[%s2] sm:$0x1]
      %v207 = vlaneseq
      %v208 = vshrl.u32 %v207, 7
      %v209 = vsub.s32 0, %v208
      %v210 = vrot.slane %v205, %v209
      %v212 = vadd.f32 %v197, %v210
      %v213 = vadd.f32 %v198, %v210
      %v214 = vadd.f32 %v199, %v210
      %v215 = vadd.f32 %v200, %v210
      %v216 = vadd.f32 %v201, %v210
      %v217 = vadd.f32 %v202, %v210
      %v218 = vadd.f32 %v203, %v210
      %v219 = vadd.f32 %v204, %v210
      %vm220 = vcmp.ge.f32.partialorder %v212, 0.0
      %vm221 = vcmp.ge.f32.partialorder %v213, 0.0
      %vm222 = vcmp.ge.f32.partialorder %v214, 0.0
      %vm223 = vcmp.ge.f32.partialorder %v215, 0.0
      %vm224 = vcmp.ge.f32.partialorder %v216, 0.0
      %vm225 = vcmp.ge.f32.partialorder %v217, 0.0
      %vm226 = vcmp.ge.f32.partialorder %v218, 0.0
      %vm227 = vcmp.ge.f32.partialorder %v219, 0.0
      %v228 = vmul.f32 %v212, 0.2
      %v229 = vmul.f32 %v213, 0.2
      %v230 = vmul.f32 %v214, 0.2
      %v231 = vmul.f32 %v215, 0.2
      %v232 = vmul.f32 %v216, 0.2
      %v233 = vmul.f32 %v217, 0.2
      %v234 = vmul.f32 %v218, 0.2
      %v235 = vmul.f32 %v219, 0.2
      %v236 = vsel %vm220, %v212, %v228
      %v237 = vsel %vm221, %v213, %v229
      %v238 = vsel %vm222, %v214, %v230
      %v239 = vsel %vm223, %v215, %v231
      %v240 = vsel %vm224, %v216, %v232
      %v241 = vsel %vm225, %v217, %v233
      %v242 = vsel %vm226, %v218, %v234
      %v243 = vsel %vm227, %v219, %v235
      %v244 = vpack.c.bf16 %v237, %v236
      %v245 = vpack.c.bf16 %v239, %v238
      %v246 = vpack.c.bf16 %v241, %v240
      %v247 = vpack.c.bf16 %v243, %v242
      %v252 = vunpack.c.l.b16 %v244
      %v253 = vunpack.c.h.b16 %v244
      %v254 = vunpack.c.l.b16 %v245
      %v255 = vunpack.c.h.b16 %v245
      %v256 = vunpack.c.l.b16 %v246
      %v257 = vunpack.c.h.b16 %v246
      %v258 = vunpack.c.l.b16 %v247
      %v259 = vunpack.c.h.b16 %v247
      %v260 = vpack.c.b16 %v252, %v252
      %v261 = vpack.c.b16 %v253, %v253
      %v262 = vpack.c.b16 %v254, %v254
      %v263 = vpack.c.b16 %v255, %v255
      %v264 = vpack.c.b16 %v256, %v256
      %v265 = vpack.c.b16 %v257, %v257
      %v266 = vpack.c.b16 %v258, %v258
      %v267 = vpack.c.b16 %v259, %v259
      %276 = vst [vmem:[%s172] sm:$0xf] %v260
      %277 = vst [vmem:[%s172 + $0x4] sm:$0xf] %v261
      %278 = vst [vmem:[%s172 + $0x8] sm:$0xf] %v262
      %279 = vst [vmem:[%s172 + $0xc] sm:$0xf] %v263
      %280 = vst [vmem:[%s172 + $0x10] sm:$0xf] %v264
      %281 = vst [vmem:[%s172 + $0x14] sm:$0xf] %v265
      %282 = vst [vmem:[%s172 + $0x18] sm:$0xf] %v266
      %283 = vst [vmem:[%s172 + $0x1c] sm:$0xf] %v267
      %s284 = smul.u32 8, %s14
      %p285 = scmp.lt.s32.totalorder %s284, 15
      %s286 = scalar_select %p285, %s284, 15
      %s287 = smul.addr %s286, 4
      %s288 = scalar_lea.vmem %s3, %s287
      // Predicated region
      $region33: #{_lambda_.8} parent=31 // pred_check
        %p289 = pneg %p100
      $region34: #{_lambda_.8} parent=31 // pred_check_branch
        %291 = sbr.rel (%p289) target = $region36
      $region35: #{_lambda_.8} parent=31 // pred_region
        %s292 = smul.u32 8, %s14
      $region36: #{_lambda_.8} parent=31 // pred_fallthru
        _
    $region32: #{_lambda_.8} parent=5 // pred_fallthru
      _
    %p293 = scmp.le.s32.totalorder 2, %s9
    // Predicated region
    $region37: #{_lambda_.8} parent=5 // pred_check
      %p294 = pneg %p293
    $region38: #{_lambda_.8} parent=5 // pred_check_branch
      %296 = sbr.rel (%p294) target = $region40
    $region39: #{_lambda_.8} parent=5 // pred_region
      %s297 = ssub.s32 %s9, 2
      // Predicated region
      $region41: #{_lambda_.8} parent=39 // pred_check
        %p298 = pneg %p106
      $region42: #{_lambda_.8} parent=39 // pred_check_branch
        %300 = sbr.rel (%p298) target = $region44
      $region43: #{_lambda_.8} parent=39 // pred_region
        %s301 = smul.u32 8, %s15
        %p302 = scmp.lt.s32.totalorder %s301, 15
        %s303 = scalar_select %p302, %s301, 15
        %s304 = smul.addr %s303, 4
        %s305 = scalar_lea.vmem %s3, %s304
      $region44: #{_lambda_.8} parent=39 // pred_fallthru
        _
    $region40: #{_lambda_.8} parent=5 // pred_fallthru
      _
  $region6: #{_lambda_.8} parent=0 // loop_footer
    %s13 = sadd.s32 1, %s9
  $region7: #{_lambda_.8} parent=0 // loop_footer_branch
    %8 = sbr.rel target = $region3
  $region8: #{_lambda_.8} parent=0 // loop_exit
    _

// kernel: _lambda_.9
$region0: #{_lambda_.9}
  #allocation0 [shape = 'u32[]', space=smem, size = 0x4, offset = 0x4, fixed_abs, tag = 'smem constant byte address 0x4 - core index']
  #allocation1 [shape = 'u32[144,128]{1,0:T(1,128)}', space=vmem, size = 0x12000, scoped, tag = 'internal scratch']
  %s0 = inlined_call_operand.vmem [shape: bf16[32,256], index: 0, kind: input, shape index: {}]
  %s1 = inlined_call_operand.vmem [shape: bf16[256,128], index: 1, kind: input, shape index: {}]
  %s2 = inlined_call_operand.vmem [shape: bf16[32,128], index: 2, kind: output, shape index: {0}]
  %s3 = inlined_call_operand.vmem [shape: f32[2,2,128], index: 3, kind: output, shape index: {1}]
  %4 = xla_tuple %s2, %s3
  %s5 = sld [smem:[#allocation0]]
  $region49: #{_lambda_.9} parent=0
    _
  %s7 = ssub.s32 1, %s5
  %s8 = scalar_select 0, %s7, %s5
  loop: start=0, step=1, limit=4
  $region2: #{_lambda_.9} parent=0 // loop_pre_header
    _
  $region3: #{_lambda_.9} parent=0 // loop_header
    %s10 = sphi 0, %s14
    %p11 = scmp.ge.s32.totalorder %s10, 4
    %s20 = sphi 0, %s22
    %s23 = sphi 0, %s20
    %s24 = sphi 0, %s23
    %s40 = sphi 0, %s24
    %s44 = sphi 0, %s44
    %s46 = sphi 0, %s44
    %s47 = sphi 0, %s46
    %s61 = sphi 0, %s47
    %s67 = sphi 0, %s69
    %s70 = sphi 0, %s67
    %s71 = sphi 0, %s70
    %s87 = sphi 0, %s71
    %s93 = sphi 0, %s95
    %s96 = sphi 0, %s93
    %s97 = sphi 0, %s96
    %s113 = sphi 0, %s97
  $region4: #{_lambda_.9} parent=0 // loop_header_branch
    %13 = sbr.rel (%p11) target = $region8
  $region5: #{_lambda_.9} parent=0 // loop_body
    %s15 = ssub.s32 %s10, 1
    %s16 = ssub.s32 %s10, 2
    %s17 = sadd.s32 %s10, 1
    %s18 = ssub.s32 %s10, %s17
    %p19 = scmp.eq.s32.totalorder %s18, 0
    %s21 = sadd.s32 %s20, 1
    %s22 = scalar_select %p19, %s20, %s21
    %p25 = pneg %p19
    %p26 = scmp.eq.s32.totalorder %s10, 1
    %p27 = por %p25, %p26
    %p28 = scmp.ne.s32.totalorder %s20, %s23
    %p29 = scmp.eq.s32.totalorder %s10, 0
    %p30 = por %p28, %p29
    %p31 = scmp.ne.s32.totalorder %s20, %s23
    %p32 = scmp.eq.s32.totalorder %s15, 1
    %p33 = por %p31, %p32
    %p34 = scmp.ne.s32.totalorder %s23, %s24
    %p35 = scmp.eq.s32.totalorder %s15, 0
    %p36 = por %p34, %p35
    %p37 = scmp.ne.s32.totalorder %s23, %s24
    %p38 = scmp.eq.s32.totalorder %s16, 1
    %p39 = por %p37, %p38
    %p41 = scmp.ne.s32.totalorder %s24, %s40
    %p42 = scmp.eq.s32.totalorder %s16, 0
    %p43 = por %p41, %p42
    %s45 = sadd.s32 %s44, 1
    %p48 = scmp.eq.s32.totalorder %s10, 1
    %p49 = scmp.ne.s32.totalorder %s44, %s46
    %p50 = scmp.eq.s32.totalorder %s10, 0
    %p51 = por %p49, %p50
    %p52 = scmp.ne.s32.totalorder %s44, %s46
    %p53 = scmp.eq.s32.totalorder %s15, 1
    %p54 = por %p52, %p53
    %p55 = scmp.ne.s32.totalorder %s46, %s47
    %p56 = scmp.eq.s32.totalorder %s15, 0
    %p57 = por %p55, %p56
    %p58 = scmp.ne.s32.totalorder %s46, %s47
    %p59 = scmp.eq.s32.totalorder %s16, 1
    %p60 = por %p58, %p59
    %p62 = scmp.ne.s32.totalorder %s47, %s61
    %p63 = scmp.eq.s32.totalorder %s16, 0
    %p64 = por %p62, %p63
    %s65 = ssub.s32 %s10, %s17
    %p66 = scmp.eq.s32.totalorder %s65, 0
    %s68 = sadd.s32 %s67, 1
    %s69 = scalar_select %p66, %s67, %s68
    %p72 = pneg %p66
    %p73 = scmp.eq.s32.totalorder %s10, 1
    %p74 = por %p72, %p73
    %p75 = scmp.ne.s32.totalorder %s67, %s70
    %p76 = scmp.eq.s32.totalorder %s10, 0
    %p77 = por %p75, %p76
    %p78 = scmp.ne.s32.totalorder %s67, %s70
    %p79 = scmp.eq.s32.totalorder %s15, 1
    %p80 = por %p78, %p79
    %p81 = scmp.ne.s32.totalorder %s70, %s71
    %p82 = scmp.eq.s32.totalorder %s15, 0
    %p83 = por %p81, %p82
    %p84 = scmp.ne.s32.totalorder %s70, %s71
    %p85 = scmp.eq.s32.totalorder %s16, 1
    %p86 = por %p84, %p85
    %p88 = scmp.ne.s32.totalorder %s71, %s87
    %p89 = scmp.eq.s32.totalorder %s16, 0
    %p90 = por %p88, %p89
    %s91 = ssub.s32 %s10, %s17
    %p92 = scmp.eq.s32.totalorder %s91, 0
    %s94 = sadd.s32 %s93, 1
    %s95 = scalar_select %p92, %s93, %s94
    %p98 = pneg %p92
    %p99 = scmp.eq.s32.totalorder %s10, 1
    %p100 = por %p98, %p99
    %p101 = scmp.ne.s32.totalorder %s93, %s96
    %p102 = scmp.eq.s32.totalorder %s10, 0
    %p103 = por %p101, %p102
    %p104 = scmp.ne.s32.totalorder %s93, %s96
    %p105 = scmp.eq.s32.totalorder %s15, 1
    %p106 = por %p104, %p105
    %p107 = scmp.ne.s32.totalorder %s96, %s97
    %p108 = scmp.eq.s32.totalorder %s15, 0
    %p109 = por %p107, %p108
    %p110 = scmp.ne.s32.totalorder %s96, %s97
    %p111 = scmp.eq.s32.totalorder %s16, 1
    %p112 = por %p110, %p111
    %p114 = scmp.ne.s32.totalorder %s97, %s113
    %p115 = scmp.eq.s32.totalorder %s16, 0
    %p116 = por %p114, %p115
    %p117 = scmp.le.s32.totalorder 1, %s10
    %p118 = scmp.lt.s32.totalorder %s10, 3
    %p119 = pnand %p117, %p118
    %p120 = pneg %p119
    // Predicated region
    $region9: #{_lambda_.9} parent=5 // pred_check
      _
    $region10: #{_lambda_.9} parent=5 // pred_check_branch
      %122 = sbr.rel (%p119) target = $region12
    $region11: #{_lambda_.9} parent=5 // pred_region
      %s123 = ssub.s32 %s10, 1
      // Predicated region
      $region13: #{_lambda_.9} parent=11 // pred_check
        %p124 = pneg %p57
      $region14: #{_lambda_.9} parent=11 // pred_check_branch
        %126 = sbr.rel (%p124) target = $region16
      $region15: #{_lambda_.9} parent=11 // pred_region
        _
      $region16: #{_lambda_.9} parent=11 // pred_fallthru
        _
    $region12: #{_lambda_.9} parent=5 // pred_fallthru
      _
    %p127 = scmp.lt.s32.totalorder %s10, 2
    // Predicated region
    $region17: #{_lambda_.9} parent=5 // pred_check
      %p128 = pneg %p127
    $region18: #{_lambda_.9} parent=5 // pred_check_branch
      %130 = sbr.rel (%p128) target = $region20
    $region19: #{_lambda_.9} parent=5 // pred_region
      // Predicated region
      $region21: #{_lambda_.9} parent=19 // pred_check
        %p131 = pneg %p30
      $region22: #{_lambda_.9} parent=19 // pred_check_branch
        %133 = sbr.rel (%p131) target = $region24
      $region23: #{_lambda_.9} parent=19 // pred_region
        %s134 = smul.u32 2, %s10
        %p135 = scmp.lt.s32.totalorder %s134, 3
        %s136 = scalar_select %p135, %s134, 3
        %s137 = smul.addr %s136, 2
        %s138 = smul.addr %s137, 4
        %s139 = scalar_lea.vmem %s0, %s138
        %s140 = smul.u32 2, %s10
      $region24: #{_lambda_.9} parent=19 // pred_fallthru
        _
    $region20: #{_lambda_.9} parent=5 // pred_fallthru
      _
    %p141 = scmp.le.s32.totalorder 1, %s10
    %p142 = scmp.lt.s32.totalorder %s10, 3
    %p143 = pnand %p141, %p142
    %p144 = pneg %p143
    // Predicated region
    $region25: #{_lambda_.9} parent=5 // pred_check
      _
    $region26: #{_lambda_.9} parent=5 // pred_check_branch
      %146 = sbr.rel (%p143) target = $region28
    $region27: #{_lambda_.9} parent=5 // pred_region
      %s147 = ssub.s32 %s10, 1
      %s148 = smul.u32 2, %s15
      %p149 = scmp.lt.s32.totalorder %s148, 3
      %s150 = scalar_select %p149, %s148, 3
      %s151 = smul.addr %s150, 2
      %s152 = smul.addr %s151, 4
      %s153 = scalar_lea.vmem %s0, %s152
      %p154 = pneg %p36
      %p155 = pneg %p33
      %p156 = pneg %p57
      %p157 = pneg %p54
      %p158 = pneg %p83
      %p159 = pneg %p80
      %s160 = smul.u32 2, %s15
      %p161 = scmp.lt.s32.totalorder %s160, 3
      %s162 = scalar_select %p161, %s160, 3
      %s163 = smul.addr %s162, 4
      %s164 = scalar_lea.vmem %s2, %s163
      %p165 = pneg %p109
      %p166 = pneg %p106
      %p167 = scmp.lt.s32.totalorder %s15, 1
      %s168 = scalar_select %p167, %s15, 1
      %s169 = smul.addr %s168, 2
      %s170 = scalar_lea.vmem %s3, %s169
      %s171 = smul.u32 2, %s15
      %p172 = scmp.lt.s32.totalorder %s171, 3
      %s173 = scalar_select %p172, %s171, 3
      %s174 = smul.addr %s173, 2
      %s175 = smul.addr %s174, 4
      %s176 = scalar_lea.vmem %s0, %s175
      %s177 = smul.u32 2, %s15
      %s178 = smul.u32 2, %s15
      %p179 = scmp.lt.s32.totalorder %s178, 3
      %s180 = scalar_select %p179, %s178, 3
      %s181 = smul.addr %s180, 4
      %s182 = scalar_lea.vmem %s2, %s181
      %s183 = smul.u32 2, %s15
      %p184 = scmp.lt.s32.totalorder %s15, 1
      %s185 = scalar_select %p184, %s15, 1
      %s186 = smul.addr %s185, 2
      %s187 = scalar_lea.vmem %s3, %s186
      %v189 = vld [vmem:[%s176] sm:$0xff]
      %v190 = vld [vmem:[%s176 + $0x8] sm:$0xff]
      %v191 = vld [vmem:[%s1] sm:$0xf]
      %v192 = vld [vmem:[%s1 + $0x4] sm:$0xf]
      %v193 = vld [vmem:[%s1 + $0x8] sm:$0xf]
      %v194 = vld [vmem:[%s1 + $0xc] sm:$0xf]
      %v195 = vld [vmem:[%s1 + $0x10] sm:$0xf]
      %v196 = vld [vmem:[%s1 + $0x14] sm:$0xf]
      %v197 = vld [vmem:[%s1 + $0x18] sm:$0xf]
      %v198 = vld [vmem:[%s1 + $0x1c] sm:$0xf]
      %v199 = vld [vmem:[%s1 + $0x20] sm:$0xf]
      %v200 = vld [vmem:[%s1 + $0x24] sm:$0xf]
      %v201 = vld [vmem:[%s1 + $0x28] sm:$0xf]
      %v202 = vld [vmem:[%s1 + $0x2c] sm:$0xf]
      %v203 = vld [vmem:[%s1 + $0x30] sm:$0xf]
      %v204 = vld [vmem:[%s1 + $0x34] sm:$0xf]
      %v205 = vld [vmem:[%s1 + $0x38] sm:$0xf]
      %v206 = vld [vmem:[%s1 + $0x3c] sm:$0xf]
      %v207 = vld [vmem:[%s1 + $0x40] sm:$0xf]
      %v208 = vld [vmem:[%s1 + $0x44] sm:$0xf]
      %v209 = vld [vmem:[%s1 + $0x48] sm:$0xf]
      %v210 = vld [vmem:[%s1 + $0x4c] sm:$0xf]
      %v211 = vld [vmem:[%s1 + $0x50] sm:$0xf]
      %v212 = vld [vmem:[%s1 + $0x54] sm:$0xf]
      %v213 = vld [vmem:[%s1 + $0x58] sm:$0xf]
      %v214 = vld [vmem:[%s1 + $0x5c] sm:$0xf]
      %v215 = vld [vmem:[%s1 + $0x60] sm:$0xf]
      %v216 = vld [vmem:[%s1 + $0x64] sm:$0xf]
      %v217 = vld [vmem:[%s1 + $0x68] sm:$0xf]
      %v218 = vld [vmem:[%s1 + $0x6c] sm:$0xf]
      %v219 = vld [vmem:[%s1 + $0x70] sm:$0xf]
      %v220 = vld [vmem:[%s1 + $0x74] sm:$0xf]
      %v221 = vld [vmem:[%s1 + $0x78] sm:$0xf]
      %v222 = vld [vmem:[%s1 + $0x7c] sm:$0xf]
      %v225 = vunpack.c.l.b16 %v189
      %v226 = vunpack.c.h.b16 %v189
      %v227 = vunpack.c.l.b16 %v190
      %v228 = vunpack.c.h.b16 %v190
      %v229 = vpack.c.b16 %v227, %v225
      %v230 = vpack.c.b16 %v228, %v226
      %v265 = vunpack.c.l.b16 %v191
      %v266 = vunpack.c.l.b16 %v192
      %v267 = vunpack.c.l.b16 %v193
      %v268 = vunpack.c.l.b16 %v194
      %v269 = vunpack.c.l.b16 %v195
      %v270 = vunpack.c.l.b16 %v196
      %v271 = vunpack.c.l.b16 %v197
      %v272 = vunpack.c.l.b16 %v198
      %v273 = vunpack.c.l.b16 %v199
      %v274 = vunpack.c.l.b16 %v200
      %v275 = vunpack.c.l.b16 %v201
      %v276 = vunpack.c.l.b16 %v202
      %v277 = vunpack.c.l.b16 %v203
      %v278 = vunpack.c.l.b16 %v204
      %v279 = vunpack.c.l.b16 %v205
      %v280 = vunpack.c.l.b16 %v206
      %v281 = vunpack.c.l.b16 %v207
      %v282 = vunpack.c.l.b16 %v208
      %v283 = vunpack.c.l.b16 %v209
      %v284 = vunpack.c.l.b16 %v210
      %v285 = vunpack.c.l.b16 %v211
      %v286 = vunpack.c.l.b16 %v212
      %v287 = vunpack.c.l.b16 %v213
      %v288 = vunpack.c.l.b16 %v214
      %v289 = vunpack.c.l.b16 %v215
      %v290 = vunpack.c.l.b16 %v216
      %v291 = vunpack.c.l.b16 %v217
      %v292 = vunpack.c.l.b16 %v218
      %v293 = vunpack.c.l.b16 %v219
      %v294 = vunpack.c.l.b16 %v220
      %v295 = vunpack.c.l.b16 %v221
      %v296 = vunpack.c.l.b16 %v222
      %v297 = vpack.c.b16 %v266, %v265
      %v298 = vpack.c.b16 %v268, %v267
      %v299 = vpack.c.b16 %v270, %v269
      %v300 = vpack.c.b16 %v272, %v271
      %v301 = vpack.c.b16 %v274, %v273
      %v302 = vpack.c.b16 %v276, %v275
      %v303 = vpack.c.b16 %v278, %v277
      %v304 = vpack.c.b16 %v280, %v279
      %v305 = vpack.c.b16 %v282, %v281
      %v306 = vpack.c.b16 %v284, %v283
      %v307 = vpack.c.b16 %v286, %v285
      %v308 = vpack.c.b16 %v288, %v287
      %v309 = vpack.c.b16 %v290, %v289
      %v310 = vpack.c.b16 %v292, %v291
      %v311 = vpack.c.b16 %v294, %v293
      %v312 = vpack.c.b16 %v296, %v295
      %329 = vmatprep.subr.bf16.mxu0 0
      %330 = vmatpush1.bf16.msra.mxu0 %v297
      %331 = vmatprep.subr.bf16.mxu0 0
      %332 = vmatpush1.bf16.msra.mxu0 %v298
      %333 = vmatprep.subr.bf16.mxu0 0
      %334 = vmatpush1.bf16.msra.mxu0 %v299
      %335 = vmatprep.subr.bf16.mxu0 0
      %336 = vmatpush1.bf16.msra.mxu0 %v300
      %337 = vmatprep.subr.bf16.mxu0 0
      %338 = vmatpush1.bf16.msra.mxu0 %v301
      %339 = vmatprep.subr.bf16.mxu0 0
      %340 = vmatpush1.bf16.msra.mxu0 %v302
      %341 = vmatprep.subr.bf16.mxu0 0
      %342 = vmatpush1.bf16.msra.mxu0 %v303
      %343 = vmatprep.subr.bf16.mxu0 0
      %344 = vmatpush1.bf16.msra.mxu0 %v304
      %345 = vmatprep.subr.bf16.mxu0 0
      %346 = vmatpush1.bf16.msra.mxu0 %v305
      %347 = vmatprep.subr.bf16.mxu0 0
      %348 = vmatpush1.bf16.msra.mxu0 %v306
      %349 = vmatprep.subr.bf16.mxu0 0
      %350 = vmatpush1.bf16.msra.mxu0 %v307
      %351 = vmatprep.subr.bf16.mxu0 0
      %352 = vmatpush1.bf16.msra.mxu0 %v308
      %353 = vmatprep.subr.bf16.mxu0 0
      %354 = vmatpush1.bf16.msra.mxu0 %v309
      %355 = vmatprep.subr.bf16.mxu0 0
      %356 = vmatpush1.bf16.msra.mxu0 %v310
      %357 = vmatprep.subr.bf16.mxu0 0
      %358 = vmatpush1.bf16.msra.mxu0 %v311
      %359 = vmatprep.subr.bf16.mxu0 0
      %360 = vmatpush1.bf16.msra.mxu0 %v312
      %361 = vmatprep.mubr.bf16.mxu0 %v230
      %362 = vmatmul.mubr.bf16.gmra.mrb[0].mxu0 %v229
      %v363 = vpop.f32.mrb[0].mxu0
      %v364 = vadd.f32 0.0, %v363
      %v365 = vpop.f32.mrb[0].mxu0
      %v366 = vpop.f32.mrb[0].mxu0
      %v367 = vadd.f32 0.0, %v366
      %v368 = vpop.f32.mrb[0].mxu0
      %369 = vdwg.mxu0
      %v370 = vpack.c.bf16 %v367, %v364
      %v372 = vunpack.c.l.b16 %v370
      %v373 = vunpack.c.h.b16 %v370
      %v374 = vpack.c.b16 %v372, %v372
      %v375 = vpack.c.b16 %v373, %v373
      %378 = vst [vmem:[%s182] sm:$0xf] %v374
      %379 = vst [vmem:[%s182 + $0x4] sm:$0xf] %v375
      %v380 = vadd.f32 %v364, %v367
      %v381 = vrot.slane %v380, 4
      %v382 = vadd.f32 %v380, %v381
      %v383 = vrot.slane %v382, 2
      %v384 = vadd.f32 %v382, %v383
      %v385 = vrot.slane %v384, 1
      %v386 = vadd.f32 %v384, %v385
      %v387 = vmul.f32 %v364, %v364
      %v388 = vmul.f32 %v367, %v367
      %v389 = vadd.f32 %v387, %v388
      %v390 = vrot.slane %v389, 4
      %v391 = vadd.f32 %v389, %v390
      %v392 = vrot.slane %v391, 2
      %v393 = vadd.f32 %v391, %v392
      %v394 = vrot.slane %v393, 1
      %v395 = vadd.f32 %v393, %v394
      %vm396 = vcmask 1040384
      %v397 = vsel %vm396, %v386, %v395
      %398 = vst [vmem:[%s187] sm:$0x3] %v397
      %s399 = smul.u32 2, %s15
      %p400 = scmp.lt.s32.totalorder %s399, 3
      %s401 = scalar_select %p400, %s399, 3
      %s402 = smul.addr %s401, 4
      %s403 = scalar_lea.vmem %s2, %s402
      %p404 = scmp.lt.s32.totalorder %s15, 1
      %s405 = scalar_select %p404, %s15, 1
      %s406 = smul.addr %s405, 2
      %s407 = scalar_lea.vmem %s3, %s406
      // Predicated region
      $region29: #{_lambda_.9} parent=27 // pred_check
        %p408 = pneg %p80
      $region30: #{_lambda_.9} parent=27 // pred_check_branch
        %410 = sbr.rel (%p408) target = $region32
      $region31: #{_lambda_.9} parent=27 // pred_region
        %s411 = smul.u32 2, %s15
      $region32: #{_lambda_.9} parent=27 // pred_fallthru
        _
      // Predicated region
      $region33: #{_lambda_.9} parent=27 // pred_check
        %p412 = pneg %p106
      $region34: #{_lambda_.9} parent=27 // pred_check_branch
        %414 = sbr.rel (%p412) target = $region36
      $region35: #{_lambda_.9} parent=27 // pred_region
        _
      $region36: #{_lambda_.9} parent=27 // pred_fallthru
        _
    $region28: #{_lambda_.9} parent=5 // pred_fallthru
      _
    %p415 = scmp.le.s32.totalorder 2, %s10
    // Predicated region
    $region37: #{_lambda_.9} parent=5 // pred_check
      %p416 = pneg %p415
    $region38: #{_lambda_.9} parent=5 // pred_check_branch
      %418 = sbr.rel (%p416) target = $region40
    $region39: #{_lambda_.9} parent=5 // pred_region
      %s419 = ssub.s32 %s10, 2
      // Predicated region
      $region41: #{_lambda_.9} parent=39 // pred_check
        %p420 = pneg %p86
      $region42: #{_lambda_.9} parent=39 // pred_check_branch
        %422 = sbr.rel (%p420) target = $region44
      $region43: #{_lambda_.9} parent=39 // pred_region
        %s423 = smul.u32 2, %s16
        %p424 = scmp.lt.s32.totalorder %s423, 3
        %s425 = scalar_select %p424, %s423, 3
        %s426 = smul.addr %s425, 4
        %s427 = scalar_lea.vmem %s2, %s426
      $region44: #{_lambda_.9} parent=39 // pred_fallthru
        _
      // Predicated region
      $region45: #{_lambda_.9} parent=39 // pred_check
        %p428 = pneg %p112
      $region46: #{_lambda_.9} parent=39 // pred_check_branch
        %430 = sbr.rel (%p428) target = $region48
      $region47: #{_lambda_.9} parent=39 // pred_region
        %p431 = scmp.lt.s32.totalorder %s16, 1
        %s432 = scalar_select %p431, %s16, 1
        %s433 = smul.addr %s432, 2
        %s434 = scalar_lea.vmem %s3, %s433
      $region48: #{_lambda_.9} parent=39 // pred_fallthru
        _
    $region40: #{_lambda_.9} parent=5 // pred_fallthru
      _
  $region6: #{_lambda_.9} parent=0 // loop_footer
    %s14 = sadd.s32 1, %s10
  $region7: #{_lambda_.9} parent=0 // loop_footer_branch
    %9 = sbr.rel target = $region3
  $region8: #{_lambda_.9} parent=0 // loop_exit
    _

// kernel: _lambda_.10
$region0: #{_lambda_.10}
  #allocation0 [shape = 'u32[]', space=smem, size = 0x4, offset = 0x4, fixed_abs, tag = 'smem constant byte address 0x4 - core index']
  #allocation1 [shape = 'u32[144,128]{1,0:T(1,128)}', space=vmem, size = 0x12000, scoped, tag = 'internal scratch']
  %s0 = inlined_call_operand.vmem [shape: bf16[32,128], index: 0, kind: input, shape index: {}, may-alias: {0,3}]
  %s1 = inlined_call_operand.vmem [shape: f32[1,128], index: 1, kind: input, shape index: {}]
  %s2 = inlined_call_operand.vmem [shape: f32[1,128], index: 2, kind: input, shape index: {}]
  %s3 = inlined_call_operand.vmem [shape: bf16[32,128], index: 3, kind: output, shape index: {}, may-alias: {0,3}]
  %s4 = sld [smem:[#allocation0]]
  $region45: #{_lambda_.10} parent=0
    _
  %s6 = ssub.s32 1, %s4
  %s7 = scalar_select 0, %s6, %s4
  loop: start=0, step=1, limit=4
  $region2: #{_lambda_.10} parent=0 // loop_pre_header
    _
  $region3: #{_lambda_.10} parent=0 // loop_header
    %s9 = sphi 0, %s13
    %p10 = scmp.ge.s32.totalorder %s9, 4
    %s19 = sphi 0, %s21
    %s22 = sphi 0, %s19
    %s23 = sphi 0, %s22
    %s39 = sphi 0, %s23
    %s43 = sphi 0, %s43
    %s45 = sphi 0, %s43
    %s46 = sphi 0, %s45
    %s60 = sphi 0, %s46
    %s64 = sphi 0, %s64
    %s66 = sphi 0, %s64
    %s67 = sphi 0, %s66
    %s81 = sphi 0, %s67
    %s87 = sphi 0, %s89
    %s90 = sphi 0, %s87
    %s91 = sphi 0, %s90
    %s107 = sphi 0, %s91
  $region4: #{_lambda_.10} parent=0 // loop_header_branch
    %12 = sbr.rel (%p10) target = $region8
  $region5: #{_lambda_.10} parent=0 // loop_body
    %s14 = ssub.s32 %s9, 1
    %s15 = ssub.s32 %s9, 2
    %s16 = sadd.s32 %s9, 1
    %s17 = ssub.s32 %s9, %s16
    %p18 = scmp.eq.s32.totalorder %s17, 0
    %s20 = sadd.s32 %s19, 1
    %s21 = scalar_select %p18, %s19, %s20
    %p24 = pneg %p18
    %p25 = scmp.eq.s32.totalorder %s9, 1
    %p26 = por %p24, %p25
    %p27 = scmp.ne.s32.totalorder %s19, %s22
    %p28 = scmp.eq.s32.totalorder %s9, 0
    %p29 = por %p27, %p28
    %p30 = scmp.ne.s32.totalorder %s19, %s22
    %p31 = scmp.eq.s32.totalorder %s14, 1
    %p32 = por %p30, %p31
    %p33 = scmp.ne.s32.totalorder %s22, %s23
    %p34 = scmp.eq.s32.totalorder %s14, 0
    %p35 = por %p33, %p34
    %p36 = scmp.ne.s32.totalorder %s22, %s23
    %p37 = scmp.eq.s32.totalorder %s15, 1
    %p38 = por %p36, %p37
    %p40 = scmp.ne.s32.totalorder %s23, %s39
    %p41 = scmp.eq.s32.totalorder %s15, 0
    %p42 = por %p40, %p41
    %s44 = sadd.s32 %s43, 1
    %p47 = scmp.eq.s32.totalorder %s9, 1
    %p48 = scmp.ne.s32.totalorder %s43, %s45
    %p49 = scmp.eq.s32.totalorder %s9, 0
    %p50 = por %p48, %p49
    %p51 = scmp.ne.s32.totalorder %s43, %s45
    %p52 = scmp.eq.s32.totalorder %s14, 1
    %p53 = por %p51, %p52
    %p54 = scmp.ne.s32.totalorder %s45, %s46
    %p55 = scmp.eq.s32.totalorder %s14, 0
    %p56 = por %p54, %p55
    %p57 = scmp.ne.s32.totalorder %s45, %s46
    %p58 = scmp.eq.s32.totalorder %s15, 1
    %p59 = por %p57, %p58
    %p61 = scmp.ne.s32.totalorder %s46, %s60
    %p62 = scmp.eq.s32.totalorder %s15, 0
    %p63 = por %p61, %p62
    %s65 = sadd.s32 %s64, 1
    %p68 = scmp.eq.s32.totalorder %s9, 1
    %p69 = scmp.ne.s32.totalorder %s64, %s66
    %p70 = scmp.eq.s32.totalorder %s9, 0
    %p71 = por %p69, %p70
    %p72 = scmp.ne.s32.totalorder %s64, %s66
    %p73 = scmp.eq.s32.totalorder %s14, 1
    %p74 = por %p72, %p73
    %p75 = scmp.ne.s32.totalorder %s66, %s67
    %p76 = scmp.eq.s32.totalorder %s14, 0
    %p77 = por %p75, %p76
    %p78 = scmp.ne.s32.totalorder %s66, %s67
    %p79 = scmp.eq.s32.totalorder %s15, 1
    %p80 = por %p78, %p79
    %p82 = scmp.ne.s32.totalorder %s67, %s81
    %p83 = scmp.eq.s32.totalorder %s15, 0
    %p84 = por %p82, %p83
    %s85 = ssub.s32 %s9, %s16
    %p86 = scmp.eq.s32.totalorder %s85, 0
    %s88 = sadd.s32 %s87, 1
    %s89 = scalar_select %p86, %s87, %s88
    %p92 = pneg %p86
    %p93 = scmp.eq.s32.totalorder %s9, 1
    %p94 = por %p92, %p93
    %p95 = scmp.ne.s32.totalorder %s87, %s90
    %p96 = scmp.eq.s32.totalorder %s9, 0
    %p97 = por %p95, %p96
    %p98 = scmp.ne.s32.totalorder %s87, %s90
    %p99 = scmp.eq.s32.totalorder %s14, 1
    %p100 = por %p98, %p99
    %p101 = scmp.ne.s32.totalorder %s90, %s91
    %p102 = scmp.eq.s32.totalorder %s14, 0
    %p103 = por %p101, %p102
    %p104 = scmp.ne.s32.totalorder %s90, %s91
    %p105 = scmp.eq.s32.totalorder %s15, 1
    %p106 = por %p104, %p105
    %p108 = scmp.ne.s32.totalorder %s91, %s107
    %p109 = scmp.eq.s32.totalorder %s15, 0
    %p110 = por %p108, %p109
    %p111 = scmp.le.s32.totalorder 1, %s9
    %p112 = scmp.lt.s32.totalorder %s9, 3
    %p113 = pnand %p111, %p112
    %p114 = pneg %p113
    // Predicated region
    $region9: #{_lambda_.10} parent=5 // pred_check
      _
    $region10: #{_lambda_.10} parent=5 // pred_check_branch
      %116 = sbr.rel (%p113) target = $region12
    $region11: #{_lambda_.10} parent=5 // pred_region
      %s117 = ssub.s32 %s9, 1
      // Predicated region
      $region13: #{_lambda_.10} parent=11 // pred_check
        %p118 = pneg %p56
      $region14: #{_lambda_.10} parent=11 // pred_check_branch
        %120 = sbr.rel (%p118) target = $region16
      $region15: #{_lambda_.10} parent=11 // pred_region
        _
      $region16: #{_lambda_.10} parent=11 // pred_fallthru
        _
      // Predicated region
      $region17: #{_lambda_.10} parent=11 // pred_check
        %p121 = pneg %p77
      $region18: #{_lambda_.10} parent=11 // pred_check_branch
        %123 = sbr.rel (%p121) target = $region20
      $region19: #{_lambda_.10} parent=11 // pred_region
        _
      $region20: #{_lambda_.10} parent=11 // pred_fallthru
        _
    $region12: #{_lambda_.10} parent=5 // pred_fallthru
      _
    %p124 = scmp.lt.s32.totalorder %s9, 2
    // Predicated region
    $region21: #{_lambda_.10} parent=5 // pred_check
      %p125 = pneg %p124
    $region22: #{_lambda_.10} parent=5 // pred_check_branch
      %127 = sbr.rel (%p125) target = $region24
    $region23: #{_lambda_.10} parent=5 // pred_region
      // Predicated region
      $region25: #{_lambda_.10} parent=23 // pred_check
        %p128 = pneg %p29
      $region26: #{_lambda_.10} parent=23 // pred_check_branch
        %130 = sbr.rel (%p128) target = $region28
      $region27: #{_lambda_.10} parent=23 // pred_region
        %s131 = smul.u32 2, %s9
        %p132 = scmp.lt.s32.totalorder %s131, 3
        %s133 = scalar_select %p132, %s131, 3
        %s134 = smul.addr %s133, 4
        %s135 = scalar_lea.vmem %s0, %s134
        %s136 = smul.u32 2, %s9
      $region28: #{_lambda_.10} parent=23 // pred_fallthru
        _
    $region24: #{_lambda_.10} parent=5 // pred_fallthru
      _
    %p137 = scmp.le.s32.totalorder 1, %s9
    %p138 = scmp.lt.s32.totalorder %s9, 3
    %p139 = pnand %p137, %p138
    %p140 = pneg %p139
    // Predicated region
    $region29: #{_lambda_.10} parent=5 // pred_check
      _
    $region30: #{_lambda_.10} parent=5 // pred_check_branch
      %142 = sbr.rel (%p139) target = $region32
    $region31: #{_lambda_.10} parent=5 // pred_region
      %s143 = ssub.s32 %s9, 1
      %s144 = smul.u32 2, %s14
      %p145 = scmp.lt.s32.totalorder %s144, 3
      %s146 = scalar_select %p145, %s144, 3
      %s147 = smul.addr %s146, 4
      %s148 = scalar_lea.vmem %s0, %s147
      %p149 = pneg %p35
      %p150 = pneg %p32
      %p151 = pneg %p56
      %p152 = pneg %p53
      %p153 = pneg %p77
      %p154 = pneg %p74
      %p155 = pneg %p103
      %p156 = pneg %p100
      %s157 = smul.u32 2, %s14
      %p158 = scmp.lt.s32.totalorder %s157, 3
      %s159 = scalar_select %p158, %s157, 3
      %s160 = smul.addr %s159, 4
      %s161 = scalar_lea.vmem %s3, %s160
      %s162 = smul.u32 2, %s14
      %p163 = scmp.lt.s32.totalorder %s162, 3
      %s164 = scalar_select %p163, %s162, 3
      %s165 = smul.addr %s164, 4
      %s166 = scalar_lea.vmem %s0, %s165
      %s167 = smul.u32 2, %s14
      %s168 = smul.u32 2, %s14
      %p169 = scmp.lt.s32.totalorder %s168, 3
      %s170 = scalar_select %p169, %s168, 3
      %s171 = smul.addr %s170, 4
      %s172 = scalar_lea.vmem %s3, %s171
      %s173 = smul.u32 2, %s14
      %v174 = vld [vmem:[%s166] sm:$0xf]
      %v175 = vld [vmem:[%s166 + $0x4] sm:$0xf]
      %v176 = vunpack.c.l.bf16 %v174
      %v177 = vunpack.c.l.bf16 %v175
      %v178 = vld [vmem:[%s1] sm:$0x1]
      %v180 = vlaneseq
      %v181 = vshrl.u32 %v180, 7
      %v182 = vsub.s32 0, %v181
      %v183 = vrot.slane %v178, %v182
      %v185 = vmul.f32 %v176, %v183
      %v186 = vmul.f32 %v177, %v183
      %v187 = vld [vmem:[%s2] sm:$0x1]
      %v189 = vlaneseq
      %v190 = vshrl.u32 %v189, 7
      %v191 = vsub.s32 0, %v190
      %v192 = vrot.slane %v187, %v191
      %v194 = vadd.f32 %v185, %v192
      %v195 = vadd.f32 %v186, %v192
      %vm196 = vcmp.ge.f32.partialorder %v194, 0.0
      %vm197 = vcmp.ge.f32.partialorder %v195, 0.0
      %v198 = vmul.f32 %v194, 0.2
      %v199 = vmul.f32 %v195, 0.2
      %v200 = vsel %vm196, %v194, %v198
      %v201 = vsel %vm197, %v195, %v199
      %v202 = vpack.c.bf16 %v201, %v200
      %v204 = vunpack.c.l.b16 %v202
      %v205 = vunpack.c.h.b16 %v202
      %v206 = vpack.c.b16 %v204, %v204
      %v207 = vpack.c.b16 %v205, %v205
      %210 = vst [vmem:[%s172] sm:$0xf] %v206
      %211 = vst [vmem:[%s172 + $0x4] sm:$0xf] %v207
      %s212 = smul.u32 2, %s14
      %p213 = scmp.lt.s32.totalorder %s212, 3
      %s214 = scalar_select %p213, %s212, 3
      %s215 = smul.addr %s214, 4
      %s216 = scalar_lea.vmem %s3, %s215
      // Predicated region
      $region33: #{_lambda_.10} parent=31 // pred_check
        %p217 = pneg %p100
      $region34: #{_lambda_.10} parent=31 // pred_check_branch
        %219 = sbr.rel (%p217) target = $region36
      $region35: #{_lambda_.10} parent=31 // pred_region
        %s220 = smul.u32 2, %s14
      $region36: #{_lambda_.10} parent=31 // pred_fallthru
        _
    $region32: #{_lambda_.10} parent=5 // pred_fallthru
      _
    %p221 = scmp.le.s32.totalorder 2, %s9
    // Predicated region
    $region37: #{_lambda_.10} parent=5 // pred_check
      %p222 = pneg %p221
    $region38: #{_lambda_.10} parent=5 // pred_check_branch
      %224 = sbr.rel (%p222) target = $region40
    $region39: #{_lambda_.10} parent=5 // pred_region
      %s225 = ssub.s32 %s9, 2
      // Predicated region
      $region41: #{_lambda_.10} parent=39 // pred_check
        %p226 = pneg %p106
      $region42: #{_lambda_.10} parent=39 // pred_check_branch
        %228 = sbr.rel (%p226) target = $region44
      $region43: #{_lambda_.10} parent=39 // pred_region
        %s229 = smul.u32 2, %s15
        %p230 = scmp.lt.s32.totalorder %s229, 3
        %s231 = scalar_select %p230, %s229, 3
        %s232 = smul.addr %s231, 4
        %s233 = scalar_lea.vmem %s3, %s232
      $region44: #{_lambda_.10} parent=39 // pred_fallthru
        _
    $region40: #{_lambda_.10} parent=5 // pred_fallthru
      _
  $region6: #{_lambda_.10} parent=0 // loop_footer
    %s13 = sadd.s32 1, %s9
  $region7: #{_lambda_.10} parent=0 // loop_footer_branch
    %8 = sbr.rel target = $region3
  $region8: #{_lambda_.10} parent=0 // loop_exit
    _

// kernel: _lambda_.11
$region0: #{_lambda_.11}
  #allocation0 [shape = 'u32[]', space=smem, size = 0x4, offset = 0x4, fixed_abs, tag = 'smem constant byte address 0x4 - core index']
  #allocation1 [shape = 'u32[144,128]{1,0:T(1,128)}', space=vmem, size = 0x12000, scoped, tag = 'internal scratch']
  %s0 = inlined_call_operand.vmem [shape: bf16[16,512], index: 0, kind: input, shape index: {}]
  %s1 = inlined_call_operand.vmem [shape: bf16[512,128], index: 1, kind: input, shape index: {}]
  %s2 = inlined_call_operand.vmem [shape: f32[16,128], index: 2, kind: output, shape index: {}]
  %s3 = sld [smem:[#allocation0]]
  $region18: #{_lambda_.11} parent=0
    _
  %s5 = ssub.s32 1, %s3
  %s6 = scalar_select 0, %s5, %s3
  // Predicated region
  $region2: #{_lambda_.11} parent=0 // pred_check
    _
  $region3: #{_lambda_.11} parent=0 // pred_check_branch
    %8 = sbr.rel (0) target = $region5
  $region4: #{_lambda_.11} parent=0 // pred_region
    _
  $region5: #{_lambda_.11} parent=0 // pred_fallthru
    _
  // Predicated region
  $region6: #{_lambda_.11} parent=0 // pred_check
    _
  $region7: #{_lambda_.11} parent=0 // pred_check_branch
    %10 = sbr.rel (0) target = $region9
  $region8: #{_lambda_.11} parent=0 // pred_region
    _
  $region9: #{_lambda_.11} parent=0 // pred_fallthru
    _
  %v12 = vld [vmem:[%s0] sm:$0xff]
  %v13 = vld [vmem:[%s0 + $0x8] sm:$0xff]
  %v14 = vld [vmem:[%s0 + $0x10] sm:$0xff]
  %v15 = vld [vmem:[%s0 + $0x18] sm:$0xff]
  %v16 = vld [vmem:[%s1] sm:$0xf]
  %v17 = vld [vmem:[%s1 + $0x4] sm:$0xf]
  %v18 = vld [vmem:[%s1 + $0x8] sm:$0xf]
  %v19 = vld [vmem:[%s1 + $0xc] sm:$0xf]
  %v20 = vld [vmem:[%s1 + $0x10] sm:$0xf]
  %v21 = vld [vmem:[%s1 + $0x14] sm:$0xf]
  %v22 = vld [vmem:[%s1 + $0x18] sm:$0xf]
  %v23 = vld [vmem:[%s1 + $0x1c] sm:$0xf]
  %v24 = vld [vmem:[%s1 + $0x20] sm:$0xf]
  %v25 = vld [vmem:[%s1 + $0x24] sm:$0xf]
  %v26 = vld [vmem:[%s1 + $0x28] sm:$0xf]
  %v27 = vld [vmem:[%s1 + $0x2c] sm:$0xf]
  %v28 = vld [vmem:[%s1 + $0x30] sm:$0xf]
  %v29 = vld [vmem:[%s1 + $0x34] sm:$0xf]
  %v30 = vld [vmem:[%s1 + $0x38] sm:$0xf]
  %v31 = vld [vmem:[%s1 + $0x3c] sm:$0xf]
  %v32 = vld [vmem:[%s1 + $0x40] sm:$0xf]
  %v33 = vld [vmem:[%s1 + $0x44] sm:$0xf]
  %v34 = vld [vmem:[%s1 + $0x48] sm:$0xf]
  %v35 = vld [vmem:[%s1 + $0x4c] sm:$0xf]
  %v36 = vld [vmem:[%s1 + $0x50] sm:$0xf]
  %v37 = vld [vmem:[%s1 + $0x54] sm:$0xf]
  %v38 = vld [vmem:[%s1 + $0x58] sm:$0xf]
  %v39 = vld [vmem:[%s1 + $0x5c] sm:$0xf]
  %v40 = vld [vmem:[%s1 + $0x60] sm:$0xf]
  %v41 = vld [vmem:[%s1 + $0x64] sm:$0xf]
  %v42 = vld [vmem:[%s1 + $0x68] sm:$0xf]
  %v43 = vld [vmem:[%s1 + $0x6c] sm:$0xf]
  %v44 = vld [vmem:[%s1 + $0x70] sm:$0xf]
  %v45 = vld [vmem:[%s1 + $0x74] sm:$0xf]
  %v46 = vld [vmem:[%s1 + $0x78] sm:$0xf]
  %v47 = vld [vmem:[%s1 + $0x7c] sm:$0xf]
  %v48 = vld [vmem:[%s1 + $0x80] sm:$0xf]
  %v49 = vld [vmem:[%s1 + $0x84] sm:$0xf]
  %v50 = vld [vmem:[%s1 + $0x88] sm:$0xf]
  %v51 = vld [vmem:[%s1 + $0x8c] sm:$0xf]
  %v52 = vld [vmem:[%s1 + $0x90] sm:$0xf]
  %v53 = vld [vmem:[%s1 + $0x94] sm:$0xf]
  %v54 = vld [vmem:[%s1 + $0x98] sm:$0xf]
  %v55 = vld [vmem:[%s1 + $0x9c] sm:$0xf]
  %v56 = vld [vmem:[%s1 + $0xa0] sm:$0xf]
  %v57 = vld [vmem:[%s1 + $0xa4] sm:$0xf]
  %v58 = vld [vmem:[%s1 + $0xa8] sm:$0xf]
  %v59 = vld [vmem:[%s1 + $0xac] sm:$0xf]
  %v60 = vld [vmem:[%s1 + $0xb0] sm:$0xf]
  %v61 = vld [vmem:[%s1 + $0xb4] sm:$0xf]
  %v62 = vld [vmem:[%s1 + $0xb8] sm:$0xf]
  %v63 = vld [vmem:[%s1 + $0xbc] sm:$0xf]
  %v64 = vld [vmem:[%s1 + $0xc0] sm:$0xf]
  %v65 = vld [vmem:[%s1 + $0xc4] sm:$0xf]
  %v66 = vld [vmem:[%s1 + $0xc8] sm:$0xf]
  %v67 = vld [vmem:[%s1 + $0xcc] sm:$0xf]
  %v68 = vld [vmem:[%s1 + $0xd0] sm:$0xf]
  %v69 = vld [vmem:[%s1 + $0xd4] sm:$0xf]
  %v70 = vld [vmem:[%s1 + $0xd8] sm:$0xf]
  %v71 = vld [vmem:[%s1 + $0xdc] sm:$0xf]
  %v72 = vld [vmem:[%s1 + $0xe0] sm:$0xf]
  %v73 = vld [vmem:[%s1 + $0xe4] sm:$0xf]
  %v74 = vld [vmem:[%s1 + $0xe8] sm:$0xf]
  %v75 = vld [vmem:[%s1 + $0xec] sm:$0xf]
  %v76 = vld [vmem:[%s1 + $0xf0] sm:$0xf]
  %v77 = vld [vmem:[%s1 + $0xf4] sm:$0xf]
  %v78 = vld [vmem:[%s1 + $0xf8] sm:$0xf]
  %v79 = vld [vmem:[%s1 + $0xfc] sm:$0xf]
  %v84 = vunpack.c.l.b16 %v12
  %v85 = vunpack.c.h.b16 %v12
  %v86 = vunpack.c.l.b16 %v13
  %v87 = vunpack.c.h.b16 %v13
  %v88 = vunpack.c.l.b16 %v14
  %v89 = vunpack.c.h.b16 %v14
  %v90 = vunpack.c.l.b16 %v15
  %v91 = vunpack.c.h.b16 %v15
  %v92 = vpack.c.b16 %v88, %v84
  %v93 = vpack.c.b16 %v89, %v85
  %v94 = vpack.c.b16 %v90, %v86
  %v95 = vpack.c.b16 %v91, %v87
  %v164 = vunpack.c.l.b16 %v16
  %v165 = vunpack.c.l.b16 %v17
  %v166 = vunpack.c.l.b16 %v18
  %v167 = vunpack.c.l.b16 %v19
  %v168 = vunpack.c.l.b16 %v20
  %v169 = vunpack.c.l.b16 %v21
  %v170 = vunpack.c.l.b16 %v22
  %v171 = vunpack.c.l.b16 %v23
  %v172 = vunpack.c.l.b16 %v24
  %v173 = vunpack.c.l.b16 %v25
  %v174 = vunpack.c.l.b16 %v26
  %v175 = vunpack.c.l.b16 %v27
  %v176 = vunpack.c.l.b16 %v28
  %v177 = vunpack.c.l.b16 %v29
  %v178 = vunpack.c.l.b16 %v30
  %v179 = vunpack.c.l.b16 %v31
  %v180 = vunpack.c.l.b16 %v32
  %v181 = vunpack.c.l.b16 %v33
  %v182 = vunpack.c.l.b16 %v34
  %v183 = vunpack.c.l.b16 %v35
  %v184 = vunpack.c.l.b16 %v36
  %v185 = vunpack.c.l.b16 %v37
  %v186 = vunpack.c.l.b16 %v38
  %v187 = vunpack.c.l.b16 %v39
  %v188 = vunpack.c.l.b16 %v40
  %v189 = vunpack.c.l.b16 %v41
  %v190 = vunpack.c.l.b16 %v42
  %v191 = vunpack.c.l.b16 %v43
  %v192 = vunpack.c.l.b16 %v44
  %v193 = vunpack.c.l.b16 %v45
  %v194 = vunpack.c.l.b16 %v46
  %v195 = vunpack.c.l.b16 %v47
  %v196 = vunpack.c.l.b16 %v48
  %v197 = vunpack.c.l.b16 %v49
  %v198 = vunpack.c.l.b16 %v50
  %v199 = vunpack.c.l.b16 %v51
  %v200 = vunpack.c.l.b16 %v52
  %v201 = vunpack.c.l.b16 %v53
  %v202 = vunpack.c.l.b16 %v54
  %v203 = vunpack.c.l.b16 %v55
  %v204 = vunpack.c.l.b16 %v56
  %v205 = vunpack.c.l.b16 %v57
  %v206 = vunpack.c.l.b16 %v58
  %v207 = vunpack.c.l.b16 %v59
  %v208 = vunpack.c.l.b16 %v60
  %v209 = vunpack.c.l.b16 %v61
  %v210 = vunpack.c.l.b16 %v62
  %v211 = vunpack.c.l.b16 %v63
  %v212 = vunpack.c.l.b16 %v64
  %v213 = vunpack.c.l.b16 %v65
  %v214 = vunpack.c.l.b16 %v66
  %v215 = vunpack.c.l.b16 %v67
  %v216 = vunpack.c.l.b16 %v68
  %v217 = vunpack.c.l.b16 %v69
  %v218 = vunpack.c.l.b16 %v70
  %v219 = vunpack.c.l.b16 %v71
  %v220 = vunpack.c.l.b16 %v72
  %v221 = vunpack.c.l.b16 %v73
  %v222 = vunpack.c.l.b16 %v74
  %v223 = vunpack.c.l.b16 %v75
  %v224 = vunpack.c.l.b16 %v76
  %v225 = vunpack.c.l.b16 %v77
  %v226 = vunpack.c.l.b16 %v78
  %v227 = vunpack.c.l.b16 %v79
  %v228 = vpack.c.b16 %v165, %v164
  %v229 = vpack.c.b16 %v167, %v166
  %v230 = vpack.c.b16 %v169, %v168
  %v231 = vpack.c.b16 %v171, %v170
  %v232 = vpack.c.b16 %v173, %v172
  %v233 = vpack.c.b16 %v175, %v174
  %v234 = vpack.c.b16 %v177, %v176
  %v235 = vpack.c.b16 %v179, %v178
  %v236 = vpack.c.b16 %v181, %v180
  %v237 = vpack.c.b16 %v183, %v182
  %v238 = vpack.c.b16 %v185, %v184
  %v239 = vpack.c.b16 %v187, %v186
  %v240 = vpack.c.b16 %v189, %v188
  %v241 = vpack.c.b16 %v191, %v190
  %v242 = vpack.c.b16 %v193, %v192
  %v243 = vpack.c.b16 %v195, %v194
  %v244 = vpack.c.b16 %v197, %v196
  %v245 = vpack.c.b16 %v199, %v198
  %v246 = vpack.c.b16 %v201, %v200
  %v247 = vpack.c.b16 %v203, %v202
  %v248 = vpack.c.b16 %v205, %v204
  %v249 = vpack.c.b16 %v207, %v206
  %v250 = vpack.c.b16 %v209, %v208
  %v251 = vpack.c.b16 %v211, %v210
  %v252 = vpack.c.b16 %v213, %v212
  %v253 = vpack.c.b16 %v215, %v214
  %v254 = vpack.c.b16 %v217, %v216
  %v255 = vpack.c.b16 %v219, %v218
  %v256 = vpack.c.b16 %v221, %v220
  %v257 = vpack.c.b16 %v223, %v222
  %v258 = vpack.c.b16 %v225, %v224
  %v259 = vpack.c.b16 %v227, %v226
  %292 = vmatprep.subr.bf16.mxu0 0
  %293 = vmatpush1.bf16.msra.mxu0 %v228
  %294 = vmatprep.subr.bf16.mxu0 0
  %295 = vmatpush1.bf16.msra.mxu0 %v229
  %296 = vmatprep.subr.bf16.mxu0 0
  %297 = vmatpush1.bf16.msra.mxu0 %v230
  %298 = vmatprep.subr.bf16.mxu0 0
  %299 = vmatpush1.bf16.msra.mxu0 %v231
  %300 = vmatprep.subr.bf16.mxu0 0
  %301 = vmatpush1.bf16.msra.mxu0 %v232
  %302 = vmatprep.subr.bf16.mxu0 0
  %303 = vmatpush1.bf16.msra.mxu0 %v233
  %304 = vmatprep.subr.bf16.mxu0 0
  %305 = vmatpush1.bf16.msra.mxu0 %v234
  %306 = vmatprep.subr.bf16.mxu0 0
  %307 = vmatpush1.bf16.msra.mxu0 %v235
  %308 = vmatprep.subr.bf16.mxu0 0
  %309 = vmatpush1.bf16.msra.mxu0 %v236
  %310 = vmatprep.subr.bf16.mxu0 0
  %311 = vmatpush1.bf16.msra.mxu0 %v237
  %312 = vmatprep.subr.bf16.mxu0 0
  %313 = vmatpush1.bf16.msra.mxu0 %v238
  %314 = vmatprep.subr.bf16.mxu0 0
  %315 = vmatpush1.bf16.msra.mxu0 %v239
  %316 = vmatprep.subr.bf16.mxu0 0
  %317 = vmatpush1.bf16.msra.mxu0 %v240
  %318 = vmatprep.subr.bf16.mxu0 0
  %319 = vmatpush1.bf16.msra.mxu0 %v241
  %320 = vmatprep.subr.bf16.mxu0 0
  %321 = vmatpush1.bf16.msra.mxu0 %v242
  %322 = vmatprep.subr.bf16.mxu0 0
  %323 = vmatpush1.bf16.msra.mxu0 %v243
  %324 = vmatprep.mubr.bf16.mxu0 %v93
  %325 = vmatmul.mubr.bf16.gmra.mrb[0].mxu0 %v92
  %v326 = vpop.f32.mrb[0].mxu0
  %v327 = vadd.f32 0.0, %v326
  %v328 = vpop.f32.mrb[0].mxu0
  %v329 = vpop.f32.mrb[0].mxu0
  %v330 = vadd.f32 0.0, %v329
  %v331 = vpop.f32.mrb[0].mxu0
  %332 = vdwg.mxu0
  %333 = vmatprep.subr.bf16.mxu0 0
  %334 = vmatpush1.bf16.msra.mxu0 %v244
  %335 = vmatprep.subr.bf16.mxu0 0
  %336 = vmatpush1.bf16.msra.mxu0 %v245
  %337 = vmatprep.subr.bf16.mxu0 0
  %338 = vmatpush1.bf16.msra.mxu0 %v246
  %339 = vmatprep.subr.bf16.mxu0 0
  %340 = vmatpush1.bf16.msra.mxu0 %v247
  %341 = vmatprep.subr.bf16.mxu0 0
  %342 = vmatpush1.bf16.msra.mxu0 %v248
  %343 = vmatprep.subr.bf16.mxu0 0
  %344 = vmatpush1.bf16.msra.mxu0 %v249
  %345 = vmatprep.subr.bf16.mxu0 0
  %346 = vmatpush1.bf16.msra.mxu0 %v250
  %347 = vmatprep.subr.bf16.mxu0 0
  %348 = vmatpush1.bf16.msra.mxu0 %v251
  %349 = vmatprep.subr.bf16.mxu0 0
  %350 = vmatpush1.bf16.msra.mxu0 %v252
  %351 = vmatprep.subr.bf16.mxu0 0
  %352 = vmatpush1.bf16.msra.mxu0 %v253
  %353 = vmatprep.subr.bf16.mxu0 0
  %354 = vmatpush1.bf16.msra.mxu0 %v254
  %355 = vmatprep.subr.bf16.mxu0 0
  %356 = vmatpush1.bf16.msra.mxu0 %v255
  %357 = vmatprep.subr.bf16.mxu0 0
  %358 = vmatpush1.bf16.msra.mxu0 %v256
  %359 = vmatprep.subr.bf16.mxu0 0
  %360 = vmatpush1.bf16.msra.mxu0 %v257
  %361 = vmatprep.subr.bf16.mxu0 0
  %362 = vmatpush1.bf16.msra.mxu0 %v258
  %363 = vmatprep.subr.bf16.mxu0 0
  %364 = vmatpush1.bf16.msra.mxu0 %v259
  %365 = vmatprep.mubr.bf16.mxu0 %v95
  %366 = vmatmul.mubr.bf16.gmra.mrb[0].mxu0 %v94
  %v367 = vpop.f32.mrb[0].mxu0
  %v368 = vadd.f32 %v327, %v367
  %v369 = vpop.f32.mrb[0].mxu0
  %v370 = vpop.f32.mrb[0].mxu0
  %v371 = vadd.f32 %v330, %v370
  %v372 = vpop.f32.mrb[0].mxu0
  %373 = vdwg.mxu0
  %v374 = vsub.f32 0.0, %v368
  %v375 = vsub.f32 0.0, %v371
  %v376 = vmul.f32 %v374, 1.442695
  %v377 = vpow.pop %v376
  %v378 = vmul.f32 %v375, 1.442695
  %v379 = vpow.pop %v378
  %v380 = vadd.f32 %v377, 1.0
  %v381 = vadd.f32 %v379, 1.0
  %v382 = vrcp.pop %v380
  %v383 = vmul.f32 1.0, %v382
  %v384 = vrcp.pop %v381
  %v385 = vmul.f32 1.0, %v384
  %386 = vst [vmem:[%s2] sm:$0xff] %v383
  %387 = vst [vmem:[%s2 + $0x8] sm:$0xff] %v385
  // Predicated region
  $region10: #{_lambda_.11} parent=0 // pred_check
    _
  $region11: #{_lambda_.11} parent=0 // pred_check_branch
    %389 = sbr.rel (0) target = $region13
  $region12: #{_lambda_.11} parent=0 // pred_region
    _
  $region13: #{_lambda_.11} parent=0 // pred_fallthru
    _
  // Predicated region
  $region14: #{_lambda_.11} parent=0 // pred_check
    _
  $region15: #{_lambda_.11} parent=0 // pred_check_branch
    %391 = sbr.rel (0) target = $region17
  $region16: #{_lambda_.11} parent=0 // pred_region
    _
  $region17: #{_lambda_.11} parent=0 // pred_fallthru
    _

</llo_original>
